<compile_context>
chip_gen: v6e
topology: v6e:2x2x1
jax: 0.10.0
libtpu: 0.0.40
codegen_flags: <defaults>
</compile_context>

<pallas_src>
import jax
import jax.numpy as jnp
from jax.experimental import pallas as pl
from jax.experimental.pallas import tpu as pltpu


def nano_output_kernel(x_ref, w_ref, b_ref, res_ref, gamma_ref, beta_ref,
                       o_ref, *, eps: float):
    # dense: x @ W on the MXU (bf16 operands, f32 accumulation).  The bf16
    # cast of the freshly-DMA'd x tile is a VPU op that hides under the DMA.
    x = x_ref[...].astype(jnp.bfloat16)
    y = jnp.dot(x, w_ref[...], preferred_element_type=jnp.float32)
    y = y + b_ref[...]                       # bias broadcast over rows (f32)

    # TODO(synk): dropout is identity in eval mode (no RNG / mask applied).

    # residual add in f32 regardless of the residual's stored dtype
    z = y + res_ref[...].astype(jnp.float32)

    # LayerNorm over last axis (biased variance, matches torch.nn.LayerNorm).
    # Two XLU reductions + EUP rsqrt ride in otherwise-free slots.
    mean = jnp.mean(z, axis=-1, keepdims=True)
    zc = z - mean
    var = jnp.mean(zc * zc, axis=-1, keepdims=True)
    inv = jax.lax.rsqrt(var + eps)
    out = zc * inv * gamma_ref[...] + beta_ref[...]

    o_ref[...] = out.astype(o_ref.dtype)


def _pick_row_tile(M: int, row_tile: int) -> int:
    """Row tile: multiple of 8 (or the full M for tiny inputs), capped at
    row_tile and at ~M/4 so the row grid keeps >= ~4 steps for v7x's 2 TCs."""
    if M <= 32:
        return M                      # full-extent block is always legal
    row_tile = max(8, (row_tile // 8) * 8)
    quarter = max(8, ((M + 3) // 4) // 8 * 8)
    return min(row_tile, quarter)


def nano_output(hidden_states, input_tensor, w, b, gamma, beta,
                eps: float = 1e-12, row_tile: int = 1024, out_dtype=None):
    """hidden_states: [B, S, I]; input_tensor: [B, S, H] -> [B, S, H]."""
    B, S, I = hidden_states.shape
    H = input_tensor.shape[-1]
    M = B * S
    if out_dtype is None:
        out_dtype = hidden_states.dtype

    # No dtype casts / pads of the big streamed tensors in the wrapper: each
    # would be a full extra HBM pass over a tensor this memory-bound kernel
    # only needs to read once.
    x2 = hidden_states.reshape(M, I)
    r2 = input_tensor.reshape(M, H)
    w_bf = w.astype(jnp.bfloat16)            # small, one-time, VMEM-resident
    b2 = b.reshape(1, H).astype(jnp.float32)
    g2 = gamma.reshape(1, H).astype(jnp.float32)
    be2 = beta.reshape(1, H).astype(jnp.float32)

    TM = _pick_row_tile(M, row_tile)
    grid_m = pl.cdiv(M, TM)                  # ragged last block handled by Pallas

    kernel = lambda *refs: nano_output_kernel(*refs, eps=eps)

    out = pl.pallas_call(
        kernel,
        out_shape=jax.ShapeDtypeStruct((M, H), out_dtype),
        grid_spec=pltpu.PrefetchScalarGridSpec(
            num_scalar_prefetch=0,
            grid=(grid_m,),
            in_specs=[
                pl.BlockSpec((TM, I), lambda i: (i, 0)),   # hidden_states tile
                pl.BlockSpec((I, H), lambda i: (0, 0)),    # weight (resident)
                pl.BlockSpec((1, H), lambda i: (0, 0)),    # bias (resident)
                pl.BlockSpec((TM, H), lambda i: (i, 0)),   # residual tile
                pl.BlockSpec((1, H), lambda i: (0, 0)),    # gamma (resident)
                pl.BlockSpec((1, H), lambda i: (0, 0)),    # beta (resident)
            ],
            out_specs=pl.BlockSpec((TM, H), lambda i: (i, 0)),
        ),
        compiler_params=pltpu.CompilerParams(
            dimension_semantics=("parallel",),
            # ~20 MiB working set at TM=1024 (f32 x, double-buffered); raise
            # the scoped limit so v5e's 16 MiB default doesn't reject it while
            # staying well under v7x's 64 MiB physical VMEM.
            vmem_limit_bytes=48 * 1024 * 1024,
        ),
    )(x2, w_bf, b2, r2, g2, be2)

    return out.reshape(B, S, H)


if __name__ == "__main__":
    # Small config consistent with NanoConfig defaults (hidden_size=384,
    # intermediate_size=1536, layer_norm_eps=1e-12).
    batch, seq = 2, 8
    hidden_size = 384
    intermediate_size = 1536
    eps = 1e-12

    key = jax.random.PRNGKey(0)
    k1, k2, k3, k4, k5, k6 = jax.random.split(key, 6)

    # Synthetic parameters mirroring nn.Linear(intermediate, hidden) (stored
    # transposed as [I, H]) and nn.LayerNorm(hidden).
    w = jax.random.normal(k1, (intermediate_size, hidden_size),
                          jnp.float32) * 0.02
    b = jax.random.normal(k2, (hidden_size,), jnp.float32) * 0.02
    gamma = jnp.ones((hidden_size,), jnp.float32) \
        + 0.1 * jax.random.normal(k3, (hidden_size,), jnp.float32)
    beta = 0.1 * jax.random.normal(k4, (hidden_size,), jnp.float32)

    hidden_states = jax.random.normal(
        k5, (batch, seq, intermediate_size), jnp.float32)
    input_tensor = jax.random.normal(
        k6, (batch, seq, hidden_size), jnp.float32)

    out = nano_output(hidden_states, input_tensor, w, b, gamma, beta, eps)
    jax.block_until_ready(out)

    # Reference in plain JAX (same math as the PyTorch forward in eval mode).
    # Quantize the matmul operands to bf16 to mirror the kernel's MXU path.
    xq = hidden_states.reshape(-1, intermediate_size) \
        .astype(jnp.bfloat16).astype(jnp.float32)
    wq = w.astype(jnp.bfloat16).astype(jnp.float32)
    y_ref = jnp.dot(xq, wq, precision=jax.lax.Precision.HIGHEST) + b
    z_ref = y_ref + input_tensor.reshape(-1, hidden_size)
    mu = z_ref.mean(-1, keepdims=True)
    var = ((z_ref - mu) ** 2).mean(-1, keepdims=True)
    ref = ((z_ref - mu) / jnp.sqrt(var + eps)) * gamma + beta
    ref = ref.reshape(batch, seq, hidden_size)

    assert jnp.allclose(out, ref, atol=5e-3, rtol=5e-3), \
        float(jnp.max(jnp.abs(out - ref)))

    print("KERNEL_OK")
</pallas_src>

<mosaic_0001>
module attributes {stable_mosaic.version = 11 : i64} {
  func.func @_lambda_(%arg0: i32, %arg1: memref<16x1536xf32, #tpu.memory_space<vmem>>, %arg2: memref<1536x384xbf16, #tpu.memory_space<vmem>>, %arg3: memref<1x384xf32, #tpu.memory_space<vmem>>, %arg4: memref<16x384xf32, #tpu.memory_space<vmem>>, %arg5: memref<1x384xf32, #tpu.memory_space<vmem>>, %arg6: memref<1x384xf32, #tpu.memory_space<vmem>>, %arg7: memref<16x384xf32, #tpu.memory_space<vmem>>) attributes {dimension_semantics = [#tpu.dimension_semantics<parallel>], iteration_bounds = array<i64: 1>, scalar_prefetch = 0 : i64, scratch_operands = 0 : i64, tpu.core_type = #tpu.core_type<tc>, window_params = [{transform_indices = @transform_0, window_bounds = array<i64: 16, 1536>}, {pipeline_mode = #tpu.pipeline_mode<synchronous>, transform_indices = @transform_1, window_bounds = array<i64: 1536, 384>}, {pipeline_mode = #tpu.pipeline_mode<synchronous>, transform_indices = @transform_2, window_bounds = array<i64: 1, 384>}, {transform_indices = @transform_3, window_bounds = array<i64: 16, 384>}, {pipeline_mode = #tpu.pipeline_mode<synchronous>, transform_indices = @transform_4, window_bounds = array<i64: 1, 384>}, {pipeline_mode = #tpu.pipeline_mode<synchronous>, transform_indices = @transform_5, window_bounds = array<i64: 1, 384>}, {transform_indices = @transform_6, window_bounds = array<i64: 16, 384>}]} {
    %c0 = arith.constant 0 : index
    %c0_0 = arith.constant 0 : index
    %0 = vector.load %arg1[%c0, %c0_0] : memref<16x1536xf32, #tpu.memory_space<vmem>>, vector<16x1536xf32>
    %1 = arith.truncf %0 : vector<16x1536xf32> to vector<16x1536xbf16>
    %c0_1 = arith.constant 0 : index
    %c0_2 = arith.constant 0 : index
    %2 = vector.load %arg2[%c0_1, %c0_2] : memref<1536x384xbf16, #tpu.memory_space<vmem>>, vector<1536x384xbf16>
    %cst = arith.constant dense<0.000000e+00> : vector<16x384xf32>
    %3 = tpu.matmul %1, %2, %cst {dimension_numbers = #tpu.dot_dimension_numbers<[1], [0], [0], [1], [0, 0, 1, 1], [], []>} : vector<16x1536xbf16>, vector<1536x384xbf16>, vector<16x384xf32> -> vector<16x384xf32>
    %c0_3 = arith.constant 0 : index
    %c0_4 = arith.constant 0 : index
    %4 = vector.load %arg3[%c0_3, %c0_4] : memref<1x384xf32, #tpu.memory_space<vmem>>, vector<1x384xf32>
    %5 = vector.broadcast %4 : vector<1x384xf32> to vector<16x384xf32>
    %6 = arith.addf %3, %5 : vector<16x384xf32>
    %c0_5 = arith.constant 0 : index
    %c0_6 = arith.constant 0 : index
    %7 = vector.load %arg4[%c0_5, %c0_6] : memref<16x384xf32, #tpu.memory_space<vmem>>, vector<16x384xf32>
    %8 = arith.addf %6, %7 : vector<16x384xf32>
    %cst_7 = arith.constant dense<0.000000e+00> : vector<16xf32>
    %9 = vector.multi_reduction <add>, %8, %cst_7 [1] : vector<16x384xf32> to vector<16xf32>
    %10 = vector.shape_cast %9 : vector<16xf32> to vector<16x1xf32>
    %cst_8 = arith.constant 3.840000e+02 : f32
    %11 = vector.broadcast %cst_8 : f32 to vector<16x1xf32>
    %12 = arith.divf %10, %11 : vector<16x1xf32>
    %13 = vector.broadcast %12 : vector<16x1xf32> to vector<16x384xf32>
    %14 = arith.subf %8, %13 : vector<16x384xf32>
    %15 = arith.mulf %14, %14 : vector<16x384xf32>
    %cst_9 = arith.constant dense<0.000000e+00> : vector<16xf32>
    %16 = vector.multi_reduction <add>, %15, %cst_9 [1] : vector<16x384xf32> to vector<16xf32>
    %17 = vector.shape_cast %16 : vector<16xf32> to vector<16x1xf32>
    %cst_10 = arith.constant 3.840000e+02 : f32
    %18 = vector.broadcast %cst_10 : f32 to vector<16x1xf32>
    %19 = arith.divf %17, %18 : vector<16x1xf32>
    %cst_11 = arith.constant 9.99999996E-13 : f32
    %20 = vector.broadcast %cst_11 : f32 to vector<16x1xf32>
    %21 = arith.addf %19, %20 : vector<16x1xf32>
    %22 = math.rsqrt %21 : vector<16x1xf32>
    %23 = vector.broadcast %22 : vector<16x1xf32> to vector<16x384xf32>
    %24 = arith.mulf %14, %23 : vector<16x384xf32>
    %c0_12 = arith.constant 0 : index
    %c0_13 = arith.constant 0 : index
    %25 = vector.load %arg5[%c0_12, %c0_13] : memref<1x384xf32, #tpu.memory_space<vmem>>, vector<1x384xf32>
    %26 = vector.broadcast %25 : vector<1x384xf32> to vector<16x384xf32>
    %27 = arith.mulf %24, %26 : vector<16x384xf32>
    %c0_14 = arith.constant 0 : index
    %c0_15 = arith.constant 0 : index
    %28 = vector.load %arg6[%c0_14, %c0_15] : memref<1x384xf32, #tpu.memory_space<vmem>>, vector<1x384xf32>
    %29 = vector.broadcast %28 : vector<1x384xf32> to vector<16x384xf32>
    %30 = arith.addf %27, %29 : vector<16x384xf32>
    %c0_16 = arith.constant 0 : index
    %c0_17 = arith.constant 0 : index
    %31 = vector.load %arg7[%c0_16, %c0_17] : memref<16x384xf32, #tpu.memory_space<vmem>>, vector<16x384xf32>
    tpu.vector_store %arg7[%c0_16, %c0_17], %30 {strides = array<i32>} : memref<16x384xf32, #tpu.memory_space<vmem>>, vector<16x384xf32>,
    return
  }
  func.func @transform_0(%arg0: i32) -> (i32, i32) {
    %c0_i32 = arith.constant 0 : i32
    %c0_i32_0 = arith.constant 0 : i32
    return %arg0, %c0_i32 : i32, i32
  }
  func.func @transform_1(%arg0: i32) -> (i32, i32) {
    %c0_i32 = arith.constant 0 : i32
    %c0_i32_0 = arith.constant 0 : i32
    %c0_i32_1 = arith.constant 0 : i32
    return %c0_i32, %c0_i32_0 : i32, i32
  }
  func.func @transform_2(%arg0: i32) -> (i32, i32) {
    %c0_i32 = arith.constant 0 : i32
    %c0_i32_0 = arith.constant 0 : i32
    %c0_i32_1 = arith.constant 0 : i32
    return %c0_i32, %c0_i32_0 : i32, i32
  }
  func.func @transform_3(%arg0: i32) -> (i32, i32) {
    %c0_i32 = arith.constant 0 : i32
    %c0_i32_0 = arith.constant 0 : i32
    return %arg0, %c0_i32 : i32, i32
  }
  func.func @transform_4(%arg0: i32) -> (i32, i32) {
    %c0_i32 = arith.constant 0 : i32
    %c0_i32_0 = arith.constant 0 : i32
    %c0_i32_1 = arith.constant 0 : i32
    return %c0_i32, %c0_i32_0 : i32, i32
  }
  func.func @transform_5(%arg0: i32) -> (i32, i32) {
    %c0_i32 = arith.constant 0 : i32
    %c0_i32_0 = arith.constant 0 : i32
    %c0_i32_1 = arith.constant 0 : i32
    return %c0_i32, %c0_i32_0 : i32, i32
  }
  func.func @transform_6(%arg0: i32) -> (i32, i32) {
    %c0_i32 = arith.constant 0 : i32
    %c0_i32_0 = arith.constant 0 : i32
    return %arg0, %c0_i32 : i32, i32
  }
}

</mosaic_0001>

<llo_original>
// kernel: tpu_custom_call.1
$region0: #{tpu_custom_call.1}
  #allocation0 [shape = 'u32[]', space=smem, size = 0x4, offset = 0x4, fixed_abs, tag = 'smem constant byte address 0x4 - core index']
  #allocation1 [shape = 'u32[144,128]{1,0:T(1,128)}', space=vmem, size = 0x12000, scoped, tag = 'internal scratch']
  %s0 = inlined_call_operand.hbm [shape: f32[16,1536], index: 0, kind: input, shape index: {}]
  %s1 = inlined_call_operand.hbm [shape: bf16[1536,384], index: 1, kind: input, shape index: {}]
  %s2 = inlined_call_operand.hbm [shape: f32[1,384], index: 2, kind: input, shape index: {}]
  %s3 = inlined_call_operand.hbm [shape: f32[16,384], index: 3, kind: input, shape index: {}]
  %s4 = inlined_call_operand.hbm [shape: f32[1,384], index: 4, kind: input, shape index: {}]
  %s5 = inlined_call_operand.hbm [shape: f32[1,384], index: 5, kind: input, shape index: {}]
  %s6 = inlined_call_operand.hbm [shape: f32[16,384], index: 6, kind: output, shape index: {}]
  %s7 = sld [smem:[#allocation0]]
  $region58: #{tpu_custom_call.1} parent=0
    _
  %s9 = ssub.s32 1, %s7
  %s10 = scalar_select 0, %s9, %s7
  $region1: #{tpu_custom_call.1} parent=0
    #allocation2 [shape = 'u8[98304]{0}', space=vmem, size = 0x18000, scoped, tag = 'input window, operand 0, single buffered']
    #allocation3 [shape = 's32[1]{0}', space=sflag, size = 0x4, scoped, tag = 'scoped memory for tpu_custom_call.1']
    #allocation4 [shape = 's32[1]{0}', space=sflag, size = 0x4, scoped, tag = 'scoped memory for tpu_custom_call.1']
    #allocation5 [shape = 'u8[1179648]{0}', space=vmem, size = 0x120000, scoped, tag = 'input window, operand 1, single buffered']
    #allocation6 [shape = 's32[1]{0}', space=sflag, size = 0x4, scoped, tag = 'scoped memory for tpu_custom_call.1']
    #allocation7 [shape = 'u8[1536]{0}', space=vmem, size = 0x800, scoped, tag = 'input window, operand 2, single buffered']
    #allocation8 [shape = 'u8[24576]{0}', space=vmem, size = 0x6000, scoped, tag = 'input window, operand 3, single buffered']
    #allocation9 [shape = 's32[1]{0}', space=sflag, size = 0x4, scoped, tag = 'scoped memory for tpu_custom_call.1']
    #allocation10 [shape = 'u8[1536]{0}', space=vmem, size = 0x800, scoped, tag = 'input window, operand 4, single buffered']
    #allocation11 [shape = 'u8[1536]{0}', space=vmem, size = 0x800, scoped, tag = 'input window, operand 5, single buffered']
    #allocation12 [shape = 's32[1]{0}', space=sflag, size = 0x4, scoped, tag = 'scoped memory for tpu_custom_call.1']
    #allocation13 [shape = 'u8[24576]{0}', space=vmem, size = 0x6000, scoped, tag = 'output window, operand 0, single buffered']
    %11 = vsyncpa [#allocation3], 0
    %12 = vsyncpa [#allocation6], 0
    %13 = vsyncpa [#allocation9], 0
    %14 = vsyncpa [#allocation12], 0
    %15 = vsyncpa [#allocation4], 0
    // Predicated region
    $region2: #{tpu_custom_call.1} parent=1 // pred_check
      _
    $region3: #{tpu_custom_call.1} parent=1 // pred_check_branch
      %17 = sbr.rel (0) target = $region5
    $region4: #{tpu_custom_call.1} parent=1 // pred_region
      %s19 = ssub.s32 3072, 3072
      %20 = vsyncadd [#allocation3], %s19
      %s21 = sshll.u32 [#allocation2], 4
      %s22 = int_to_ptr.vmem [resolvable:$true] %s21
      %27 = dma.hbm_to_vmem [thread:$0]  %s0, 3072, %s22, [#allocation3], 1536, 1536, 96
    $region5: #{tpu_custom_call.1} parent=1 // pred_fallthru
      _
    // Predicated region
    $region6: #{tpu_custom_call.1} parent=1 // pred_check
      _
    $region7: #{tpu_custom_call.1} parent=1 // pred_check_branch
      %29 = sbr.rel (0) target = $region9
    $region8: #{tpu_custom_call.1} parent=1 // pred_region
      %s31 = ssub.s32 36864, 36864
      %32 = vsyncadd [#allocation6], %s31
      %s33 = sshll.u32 [#allocation5], 4
      %s34 = int_to_ptr.vmem [resolvable:$true] %s33
      %39 = dma.hbm_to_vmem [thread:$0]  %s1, 36864, %s34, [#allocation6], 192, 192, 12
    $region9: #{tpu_custom_call.1} parent=1 // pred_fallthru
      _
    // Predicated region
    $region10: #{tpu_custom_call.1} parent=1 // pred_check
      _
    $region11: #{tpu_custom_call.1} parent=1 // pred_check_branch
      %41 = sbr.rel (0) target = $region13
    $region12: #{tpu_custom_call.1} parent=1 // pred_region
      %s43 = ssub.s32 48, 48
      %44 = vsyncadd [#allocation6], %s43
      %s46 = sshll.u32 [#allocation7], 4
      %s47 = int_to_ptr.vmem [resolvable:$true] %s46
      %49 = dma.hbm_to_vmem [thread:$0]  %s2, 48, %s47, [#allocation6]
    $region13: #{tpu_custom_call.1} parent=1 // pred_fallthru
      _
    // Predicated region
    $region14: #{tpu_custom_call.1} parent=1 // pred_check
      _
    $region15: #{tpu_custom_call.1} parent=1 // pred_check_branch
      %51 = sbr.rel (0) target = $region17
    $region16: #{tpu_custom_call.1} parent=1 // pred_region
      %s53 = ssub.s32 768, 768
      %54 = vsyncadd [#allocation9], %s53
      %s55 = sshll.u32 [#allocation8], 4
      %s56 = int_to_ptr.vmem [resolvable:$true] %s55
      %61 = dma.hbm_to_vmem [thread:$0]  %s3, 768, %s56, [#allocation9], 384, 384, 24
    $region17: #{tpu_custom_call.1} parent=1 // pred_fallthru
      _
    // Predicated region
    $region18: #{tpu_custom_call.1} parent=1 // pred_check
      _
    $region19: #{tpu_custom_call.1} parent=1 // pred_check_branch
      %63 = sbr.rel (0) target = $region21
    $region20: #{tpu_custom_call.1} parent=1 // pred_region
      %s65 = ssub.s32 48, 48
      %66 = vsyncadd [#allocation9], %s65
      %s68 = sshll.u32 [#allocation10], 4
      %s69 = int_to_ptr.vmem [resolvable:$true] %s68
      %71 = dma.hbm_to_vmem [thread:$0]  %s4, 48, %s69, [#allocation9]
    $region21: #{tpu_custom_call.1} parent=1 // pred_fallthru
      _
    // Predicated region
    $region22: #{tpu_custom_call.1} parent=1 // pred_check
      _
    $region23: #{tpu_custom_call.1} parent=1 // pred_check_branch
      %73 = sbr.rel (0) target = $region25
    $region24: #{tpu_custom_call.1} parent=1 // pred_region
      %s75 = ssub.s32 48, 48
      %76 = vsyncadd [#allocation12], %s75
      %s78 = sshll.u32 [#allocation11], 4
      %s79 = int_to_ptr.vmem [resolvable:$true] %s78
      %81 = dma.hbm_to_vmem [thread:$0]  %s5, 48, %s79, [#allocation12]
    $region25: #{tpu_custom_call.1} parent=1 // pred_fallthru
      _
    // Predicated region
    $region26: #{tpu_custom_call.1} parent=1 // pred_check
      _
    $region27: #{tpu_custom_call.1} parent=1 // pred_check_branch
      %83 = sbr.rel (0) target = $region29
    $region28: #{tpu_custom_call.1} parent=1 // pred_region
      %84 = dma.done [#allocation3], 3072
    $region29: #{tpu_custom_call.1} parent=1 // pred_fallthru
      _
    // Predicated region
    $region30: #{tpu_custom_call.1} parent=1 // pred_check
      _
    $region31: #{tpu_custom_call.1} parent=1 // pred_check_branch
      %86 = sbr.rel (0) target = $region33
    $region32: #{tpu_custom_call.1} parent=1 // pred_region
      %87 = dma.done [#allocation6], 36864
    $region33: #{tpu_custom_call.1} parent=1 // pred_fallthru
      _
    // Predicated region
    $region34: #{tpu_custom_call.1} parent=1 // pred_check
      _
    $region35: #{tpu_custom_call.1} parent=1 // pred_check_branch
      %89 = sbr.rel (0) target = $region37
    $region36: #{tpu_custom_call.1} parent=1 // pred_region
      %90 = dma.done [#allocation6], 48
    $region37: #{tpu_custom_call.1} parent=1 // pred_fallthru
      _
    // Predicated region
    $region38: #{tpu_custom_call.1} parent=1 // pred_check
      _
    $region39: #{tpu_custom_call.1} parent=1 // pred_check_branch
      %92 = sbr.rel (0) target = $region41
    $region40: #{tpu_custom_call.1} parent=1 // pred_region
      %93 = dma.done [#allocation9], 768
    $region41: #{tpu_custom_call.1} parent=1 // pred_fallthru
      _
    // Predicated region
    $region42: #{tpu_custom_call.1} parent=1 // pred_check
      _
    $region43: #{tpu_custom_call.1} parent=1 // pred_check_branch
      %95 = sbr.rel (0) target = $region45
    $region44: #{tpu_custom_call.1} parent=1 // pred_region
      %96 = dma.done [#allocation9], 48
    $region45: #{tpu_custom_call.1} parent=1 // pred_fallthru
      _
    // Predicated region
    $region46: #{tpu_custom_call.1} parent=1 // pred_check
      _
    $region47: #{tpu_custom_call.1} parent=1 // pred_check_branch
      %98 = sbr.rel (0) target = $region49
    $region48: #{tpu_custom_call.1} parent=1 // pred_region
      %99 = dma.done [#allocation12], 48
    $region49: #{tpu_custom_call.1} parent=1 // pred_fallthru
      _
    %v101 = vld [vmem:[#allocation2] sm:$0xff]
    %v102 = vld [vmem:[#allocation2 + $0x8] sm:$0xff]
    %v103 = vld [vmem:[#allocation2 + $0x10] sm:$0xff]
    %v104 = vld [vmem:[#allocation2 + $0x18] sm:$0xff]
    %v105 = vld [vmem:[#allocation2 + $0x20] sm:$0xff]
    %v106 = vld [vmem:[#allocation2 + $0x28] sm:$0xff]
    %v107 = vld [vmem:[#allocation2 + $0x30] sm:$0xff]
    %v108 = vld [vmem:[#allocation2 + $0x38] sm:$0xff]
    %v109 = vld [vmem:[#allocation2 + $0x40] sm:$0xff]
    %v110 = vld [vmem:[#allocation2 + $0x48] sm:$0xff]
    %v111 = vld [vmem:[#allocation2 + $0x50] sm:$0xff]
    %v112 = vld [vmem:[#allocation2 + $0x58] sm:$0xff]
    %v113 = vld [vmem:[#allocation2 + $0x60] sm:$0xff]
    %v114 = vld [vmem:[#allocation2 + $0x68] sm:$0xff]
    %v115 = vld [vmem:[#allocation2 + $0x70] sm:$0xff]
    %v116 = vld [vmem:[#allocation2 + $0x78] sm:$0xff]
    %v117 = vld [vmem:[#allocation2 + $0x80] sm:$0xff]
    %v118 = vld [vmem:[#allocation2 + $0x88] sm:$0xff]
    %v119 = vld [vmem:[#allocation2 + $0x90] sm:$0xff]
    %v120 = vld [vmem:[#allocation2 + $0x98] sm:$0xff]
    %v121 = vld [vmem:[#allocation2 + $0xa0] sm:$0xff]
    %v122 = vld [vmem:[#allocation2 + $0xa8] sm:$0xff]
    %v123 = vld [vmem:[#allocation2 + $0xb0] sm:$0xff]
    %v124 = vld [vmem:[#allocation2 + $0xb8] sm:$0xff]
    %v125 = vpack.c.bf16 %v113, %v101
    %v126 = vpack.c.bf16 %v114, %v102
    %v127 = vpack.c.bf16 %v115, %v103
    %v128 = vpack.c.bf16 %v116, %v104
    %v129 = vpack.c.bf16 %v117, %v105
    %v130 = vpack.c.bf16 %v118, %v106
    %v131 = vpack.c.bf16 %v119, %v107
    %v132 = vpack.c.bf16 %v120, %v108
    %v133 = vpack.c.bf16 %v121, %v109
    %v134 = vpack.c.bf16 %v122, %v110
    %v135 = vpack.c.bf16 %v123, %v111
    %v136 = vpack.c.bf16 %v124, %v112
    %v137 = vld [vmem:[#allocation5] sm:$0xff]
    %v138 = vld [vmem:[#allocation5 + $0x8] sm:$0xf]
    %v139 = vld [vmem:[#allocation5 + $0xc] sm:$0xff]
    %v140 = vld [vmem:[#allocation5 + $0x14] sm:$0xf]
    %v141 = vld [vmem:[#allocation5 + $0x18] sm:$0xff]
    %v142 = vld [vmem:[#allocation5 + $0x20] sm:$0xf]
    %v143 = vld [vmem:[#allocation5 + $0x24] sm:$0xff]
    %v144 = vld [vmem:[#allocation5 + $0x2c] sm:$0xf]
    %v145 = vld [vmem:[#allocation5 + $0x30] sm:$0xff]
    %v146 = vld [vmem:[#allocation5 + $0x38] sm:$0xf]
    %v147 = vld [vmem:[#allocation5 + $0x3c] sm:$0xff]
    %v148 = vld [vmem:[#allocation5 + $0x44] sm:$0xf]
    %v149 = vld [vmem:[#allocation5 + $0x48] sm:$0xff]
    %v150 = vld [vmem:[#allocation5 + $0x50] sm:$0xf]
    %v151 = vld [vmem:[#allocation5 + $0x54] sm:$0xff]
    %v152 = vld [vmem:[#allocation5 + $0x5c] sm:$0xf]
    %v153 = vld [vmem:[#allocation5 + $0x60] sm:$0xff]
    %v154 = vld [vmem:[#allocation5 + $0x68] sm:$0xf]
    %v155 = vld [vmem:[#allocation5 + $0x6c] sm:$0xff]
    %v156 = vld [vmem:[#allocation5 + $0x74] sm:$0xf]
    %v157 = vld [vmem:[#allocation5 + $0x78] sm:$0xff]
    %v158 = vld [vmem:[#allocation5 + $0x80] sm:$0xf]
    %v159 = vld [vmem:[#allocation5 + $0x84] sm:$0xff]
    %v160 = vld [vmem:[#allocation5 + $0x8c] sm:$0xf]
    %v161 = vld [vmem:[#allocation5 + $0x90] sm:$0xff]
    %v162 = vld [vmem:[#allocation5 + $0x98] sm:$0xf]
    %v163 = vld [vmem:[#allocation5 + $0x9c] sm:$0xff]
    %v164 = vld [vmem:[#allocation5 + $0xa4] sm:$0xf]
    %v165 = vld [vmem:[#allocation5 + $0xa8] sm:$0xff]
    %v166 = vld [vmem:[#allocation5 + $0xb0] sm:$0xf]
    %v167 = vld [vmem:[#allocation5 + $0xb4] sm:$0xff]
    %v168 = vld [vmem:[#allocation5 + $0xbc] sm:$0xf]
    %v169 = vld [vmem:[#allocation5 + $0xc0] sm:$0xff]
    %v170 = vld [vmem:[#allocation5 + $0xc8] sm:$0xf]
    %v171 = vld [vmem:[#allocation5 + $0xcc] sm:$0xff]
    %v172 = vld [vmem:[#allocation5 + $0xd4] sm:$0xf]
    %v173 = vld [vmem:[#allocation5 + $0xd8] sm:$0xff]
    %v174 = vld [vmem:[#allocation5 + $0xe0] sm:$0xf]
    %v175 = vld [vmem:[#allocation5 + $0xe4] sm:$0xff]
    %v176 = vld [vmem:[#allocation5 + $0xec] sm:$0xf]
    %v177 = vld [vmem:[#allocation5 + $0xf0] sm:$0xff]
    %v178 = vld [vmem:[#allocation5 + $0xf8] sm:$0xf]
    %v179 = vld [vmem:[#allocation5 + $0xfc] sm:$0xff]
    %v180 = vld [vmem:[#allocation5 + $0x104] sm:$0xf]
    %v181 = vld [vmem:[#allocation5 + $0x108] sm:$0xff]
    %v182 = vld [vmem:[#allocation5 + $0x110] sm:$0xf]
    %v183 = vld [vmem:[#allocation5 + $0x114] sm:$0xff]
    %v184 = vld [vmem:[#allocation5 + $0x11c] sm:$0xf]
    %v185 = vld [vmem:[#allocation5 + $0x120] sm:$0xff]
    %v186 = vld [vmem:[#allocation5 + $0x128] sm:$0xf]
    %v187 = vld [vmem:[#allocation5 + $0x12c] sm:$0xff]
    %v188 = vld [vmem:[#allocation5 + $0x134] sm:$0xf]
    %v189 = vld [vmem:[#allocation5 + $0x138] sm:$0xff]
    %v190 = vld [vmem:[#allocation5 + $0x140] sm:$0xf]
    %v191 = vld [vmem:[#allocation5 + $0x144] sm:$0xff]
    %v192 = vld [vmem:[#allocation5 + $0x14c] sm:$0xf]
    %v193 = vld [vmem:[#allocation5 + $0x150] sm:$0xff]
    %v194 = vld [vmem:[#allocation5 + $0x158] sm:$0xf]
    %v195 = vld [vmem:[#allocation5 + $0x15c] sm:$0xff]
    %v196 = vld [vmem:[#allocation5 + $0x164] sm:$0xf]
    %v197 = vld [vmem:[#allocation5 + $0x168] sm:$0xff]
    %v198 = vld [vmem:[#allocation5 + $0x170] sm:$0xf]
    %v199 = vld [vmem:[#allocation5 + $0x174] sm:$0xff]
    %v200 = vld [vmem:[#allocation5 + $0x17c] sm:$0xf]
    %v201 = vld [vmem:[#allocation5 + $0x180] sm:$0xff]
    %v202 = vld [vmem:[#allocation5 + $0x188] sm:$0xf]
    %v203 = vld [vmem:[#allocation5 + $0x18c] sm:$0xff]
    %v204 = vld [vmem:[#allocation5 + $0x194] sm:$0xf]
    %v205 = vld [vmem:[#allocation5 + $0x198] sm:$0xff]
    %v206 = vld [vmem:[#allocation5 + $0x1a0] sm:$0xf]
    %v207 = vld [vmem:[#allocation5 + $0x1a4] sm:$0xff]
    %v208 = vld [vmem:[#allocation5 + $0x1ac] sm:$0xf]
    %v209 = vld [vmem:[#allocation5 + $0x1b0] sm:$0xff]
    %v210 = vld [vmem:[#allocation5 + $0x1b8] sm:$0xf]
    %v211 = vld [vmem:[#allocation5 + $0x1bc] sm:$0xff]
    %v212 = vld [vmem:[#allocation5 + $0x1c4] sm:$0xf]
    %v213 = vld [vmem:[#allocation5 + $0x1c8] sm:$0xff]
    %v214 = vld [vmem:[#allocation5 + $0x1d0] sm:$0xf]
    %v215 = vld [vmem:[#allocation5 + $0x1d4] sm:$0xff]
    %v216 = vld [vmem:[#allocation5 + $0x1dc] sm:$0xf]
    %v217 = vld [vmem:[#allocation5 + $0x1e0] sm:$0xff]
    %v218 = vld [vmem:[#allocation5 + $0x1e8] sm:$0xf]
    %v219 = vld [vmem:[#allocation5 + $0x1ec] sm:$0xff]
    %v220 = vld [vmem:[#allocation5 + $0x1f4] sm:$0xf]
    %v221 = vld [vmem:[#allocation5 + $0x1f8] sm:$0xff]
    %v222 = vld [vmem:[#allocation5 + $0x200] sm:$0xf]
    %v223 = vld [vmem:[#allocation5 + $0x204] sm:$0xff]
    %v224 = vld [vmem:[#allocation5 + $0x20c] sm:$0xf]
    %v225 = vld [vmem:[#allocation5 + $0x210] sm:$0xff]
    %v226 = vld [vmem:[#allocation5 + $0x218] sm:$0xf]
    %v227 = vld [vmem:[#allocation5 + $0x21c] sm:$0xff]
    %v228 = vld [vmem:[#allocation5 + $0x224] sm:$0xf]
    %v229 = vld [vmem:[#allocation5 + $0x228] sm:$0xff]
    %v230 = vld [vmem:[#allocation5 + $0x230] sm:$0xf]
    %v231 = vld [vmem:[#allocation5 + $0x234] sm:$0xff]
    %v232 = vld [vmem:[#allocation5 + $0x23c] sm:$0xf]
    %v233 = vld [vmem:[#allocation5 + $0x240] sm:$0xff]
    %v234 = vld [vmem:[#allocation5 + $0x248] sm:$0xf]
    %v235 = vld [vmem:[#allocation5 + $0x24c] sm:$0xff]
    %v236 = vld [vmem:[#allocation5 + $0x254] sm:$0xf]
    %v237 = vld [vmem:[#allocation5 + $0x258] sm:$0xff]
    %v238 = vld [vmem:[#allocation5 + $0x260] sm:$0xf]
    %v239 = vld [vmem:[#allocation5 + $0x264] sm:$0xff]
    %v240 = vld [vmem:[#allocation5 + $0x26c] sm:$0xf]
    %v241 = vld [vmem:[#allocation5 + $0x270] sm:$0xff]
    %v242 = vld [vmem:[#allocation5 + $0x278] sm:$0xf]
    %v243 = vld [vmem:[#allocation5 + $0x27c] sm:$0xff]
    %v244 = vld [vmem:[#allocation5 + $0x284] sm:$0xf]
    %v245 = vld [vmem:[#allocation5 + $0x288] sm:$0xff]
    %v246 = vld [vmem:[#allocation5 + $0x290] sm:$0xf]
    %v247 = vld [vmem:[#allocation5 + $0x294] sm:$0xff]
    %v248 = vld [vmem:[#allocation5 + $0x29c] sm:$0xf]
    %v249 = vld [vmem:[#allocation5 + $0x2a0] sm:$0xff]
    %v250 = vld [vmem:[#allocation5 + $0x2a8] sm:$0xf]
    %v251 = vld [vmem:[#allocation5 + $0x2ac] sm:$0xff]
    %v252 = vld [vmem:[#allocation5 + $0x2b4] sm:$0xf]
    %v253 = vld [vmem:[#allocation5 + $0x2b8] sm:$0xff]
    %v254 = vld [vmem:[#allocation5 + $0x2c0] sm:$0xf]
    %v255 = vld [vmem:[#allocation5 + $0x2c4] sm:$0xff]
    %v256 = vld [vmem:[#allocation5 + $0x2cc] sm:$0xf]
    %v257 = vld [vmem:[#allocation5 + $0x2d0] sm:$0xff]
    %v258 = vld [vmem:[#allocation5 + $0x2d8] sm:$0xf]
    %v259 = vld [vmem:[#allocation5 + $0x2dc] sm:$0xff]
    %v260 = vld [vmem:[#allocation5 + $0x2e4] sm:$0xf]
    %v261 = vld [vmem:[#allocation5 + $0x2e8] sm:$0xff]
    %v262 = vld [vmem:[#allocation5 + $0x2f0] sm:$0xf]
    %v263 = vld [vmem:[#allocation5 + $0x2f4] sm:$0xff]
    %v264 = vld [vmem:[#allocation5 + $0x2fc] sm:$0xf]
    %v265 = vld [vmem:[#allocation5 + $0x300] sm:$0xff]
    %v266 = vld [vmem:[#allocation5 + $0x308] sm:$0xf]
    %v267 = vld [vmem:[#allocation5 + $0x30c] sm:$0xff]
    %v268 = vld [vmem:[#allocation5 + $0x314] sm:$0xf]
    %v269 = vld [vmem:[#allocation5 + $0x318] sm:$0xff]
    %v270 = vld [vmem:[#allocation5 + $0x320] sm:$0xf]
    %v271 = vld [vmem:[#allocation5 + $0x324] sm:$0xff]
    %v272 = vld [vmem:[#allocation5 + $0x32c] sm:$0xf]
    %v273 = vld [vmem:[#allocation5 + $0x330] sm:$0xff]
    %v274 = vld [vmem:[#allocation5 + $0x338] sm:$0xf]
    %v275 = vld [vmem:[#allocation5 + $0x33c] sm:$0xff]
    %v276 = vld [vmem:[#allocation5 + $0x344] sm:$0xf]
    %v277 = vld [vmem:[#allocation5 + $0x348] sm:$0xff]
    %v278 = vld [vmem:[#allocation5 + $0x350] sm:$0xf]
    %v279 = vld [vmem:[#allocation5 + $0x354] sm:$0xff]
    %v280 = vld [vmem:[#allocation5 + $0x35c] sm:$0xf]
    %v281 = vld [vmem:[#allocation5 + $0x360] sm:$0xff]
    %v282 = vld [vmem:[#allocation5 + $0x368] sm:$0xf]
    %v283 = vld [vmem:[#allocation5 + $0x36c] sm:$0xff]
    %v284 = vld [vmem:[#allocation5 + $0x374] sm:$0xf]
    %v285 = vld [vmem:[#allocation5 + $0x378] sm:$0xff]
    %v286 = vld [vmem:[#allocation5 + $0x380] sm:$0xf]
    %v287 = vld [vmem:[#allocation5 + $0x384] sm:$0xff]
    %v288 = vld [vmem:[#allocation5 + $0x38c] sm:$0xf]
    %v289 = vld [vmem:[#allocation5 + $0x390] sm:$0xff]
    %v290 = vld [vmem:[#allocation5 + $0x398] sm:$0xf]
    %v291 = vld [vmem:[#allocation5 + $0x39c] sm:$0xff]
    %v292 = vld [vmem:[#allocation5 + $0x3a4] sm:$0xf]
    %v293 = vld [vmem:[#allocation5 + $0x3a8] sm:$0xff]
    %v294 = vld [vmem:[#allocation5 + $0x3b0] sm:$0xf]
    %v295 = vld [vmem:[#allocation5 + $0x3b4] sm:$0xff]
    %v296 = vld [vmem:[#allocation5 + $0x3bc] sm:$0xf]
    %v297 = vld [vmem:[#allocation5 + $0x3c0] sm:$0xff]
    %v298 = vld [vmem:[#allocation5 + $0x3c8] sm:$0xf]
    %v299 = vld [vmem:[#allocation5 + $0x3cc] sm:$0xff]
    %v300 = vld [vmem:[#allocation5 + $0x3d4] sm:$0xf]
    %v301 = vld [vmem:[#allocation5 + $0x3d8] sm:$0xff]
    %v302 = vld [vmem:[#allocation5 + $0x3e0] sm:$0xf]
    %v303 = vld [vmem:[#allocation5 + $0x3e4] sm:$0xff]
    %v304 = vld [vmem:[#allocation5 + $0x3ec] sm:$0xf]
    %v305 = vld [vmem:[#allocation5 + $0x3f0] sm:$0xff]
    %v306 = vld [vmem:[#allocation5 + $0x3f8] sm:$0xf]
    %v307 = vld [vmem:[#allocation5 + $0x3fc] sm:$0xff]
    %v308 = vld [vmem:[#allocation5 + $0x404] sm:$0xf]
    %v309 = vld [vmem:[#allocation5 + $0x408] sm:$0xff]
    %v310 = vld [vmem:[#allocation5 + $0x410] sm:$0xf]
    %v311 = vld [vmem:[#allocation5 + $0x414] sm:$0xff]
    %v312 = vld [vmem:[#allocation5 + $0x41c] sm:$0xf]
    %v313 = vld [vmem:[#allocation5 + $0x420] sm:$0xff]
    %v314 = vld [vmem:[#allocation5 + $0x428] sm:$0xf]
    %v315 = vld [vmem:[#allocation5 + $0x42c] sm:$0xff]
    %v316 = vld [vmem:[#allocation5 + $0x434] sm:$0xf]
    %v317 = vld [vmem:[#allocation5 + $0x438] sm:$0xff]
    %v318 = vld [vmem:[#allocation5 + $0x440] sm:$0xf]
    %v319 = vld [vmem:[#allocation5 + $0x444] sm:$0xff]
    %v320 = vld [vmem:[#allocation5 + $0x44c] sm:$0xf]
    %v321 = vld [vmem:[#allocation5 + $0x450] sm:$0xff]
    %v322 = vld [vmem:[#allocation5 + $0x458] sm:$0xf]
    %v323 = vld [vmem:[#allocation5 + $0x45c] sm:$0xff]
    %v324 = vld [vmem:[#allocation5 + $0x464] sm:$0xf]
    %v325 = vld [vmem:[#allocation5 + $0x468] sm:$0xff]
    %v326 = vld [vmem:[#allocation5 + $0x470] sm:$0xf]
    %v327 = vld [vmem:[#allocation5 + $0x474] sm:$0xff]
    %v328 = vld [vmem:[#allocation5 + $0x47c] sm:$0xf]
    %v329 = vld [vmem:[#allocation5 + $0x480] sm:$0xff]
    %v330 = vld [vmem:[#allocation5 + $0x488] sm:$0xf]
    %v331 = vld [vmem:[#allocation5 + $0x48c] sm:$0xff]
    %v332 = vld [vmem:[#allocation5 + $0x494] sm:$0xf]
    %v333 = vld [vmem:[#allocation5 + $0x498] sm:$0xff]
    %v334 = vld [vmem:[#allocation5 + $0x4a0] sm:$0xf]
    %v335 = vld [vmem:[#allocation5 + $0x4a4] sm:$0xff]
    %v336 = vld [vmem:[#allocation5 + $0x4ac] sm:$0xf]
    %v337 = vld [vmem:[#allocation5 + $0x4b0] sm:$0xff]
    %v338 = vld [vmem:[#allocation5 + $0x4b8] sm:$0xf]
    %v339 = vld [vmem:[#allocation5 + $0x4bc] sm:$0xff]
    %v340 = vld [vmem:[#allocation5 + $0x4c4] sm:$0xf]
    %v341 = vld [vmem:[#allocation5 + $0x4c8] sm:$0xff]
    %v342 = vld [vmem:[#allocation5 + $0x4d0] sm:$0xf]
    %v343 = vld [vmem:[#allocation5 + $0x4d4] sm:$0xff]
    %v344 = vld [vmem:[#allocation5 + $0x4dc] sm:$0xf]
    %v345 = vld [vmem:[#allocation5 + $0x4e0] sm:$0xff]
    %v346 = vld [vmem:[#allocation5 + $0x4e8] sm:$0xf]
    %v347 = vld [vmem:[#allocation5 + $0x4ec] sm:$0xff]
    %v348 = vld [vmem:[#allocation5 + $0x4f4] sm:$0xf]
    %v349 = vld [vmem:[#allocation5 + $0x4f8] sm:$0xff]
    %v350 = vld [vmem:[#allocation5 + $0x500] sm:$0xf]
    %v351 = vld [vmem:[#allocation5 + $0x504] sm:$0xff]
    %v352 = vld [vmem:[#allocation5 + $0x50c] sm:$0xf]
    %v353 = vld [vmem:[#allocation5 + $0x510] sm:$0xff]
    %v354 = vld [vmem:[#allocation5 + $0x518] sm:$0xf]
    %v355 = vld [vmem:[#allocation5 + $0x51c] sm:$0xff]
    %v356 = vld [vmem:[#allocation5 + $0x524] sm:$0xf]
    %v357 = vld [vmem:[#allocation5 + $0x528] sm:$0xff]
    %v358 = vld [vmem:[#allocation5 + $0x530] sm:$0xf]
    %v359 = vld [vmem:[#allocation5 + $0x534] sm:$0xff]
    %v360 = vld [vmem:[#allocation5 + $0x53c] sm:$0xf]
    %v361 = vld [vmem:[#allocation5 + $0x540] sm:$0xff]
    %v362 = vld [vmem:[#allocation5 + $0x548] sm:$0xf]
    %v363 = vld [vmem:[#allocation5 + $0x54c] sm:$0xff]
    %v364 = vld [vmem:[#allocation5 + $0x554] sm:$0xf]
    %v365 = vld [vmem:[#allocation5 + $0x558] sm:$0xff]
    %v366 = vld [vmem:[#allocation5 + $0x560] sm:$0xf]
    %v367 = vld [vmem:[#allocation5 + $0x564] sm:$0xff]
    %v368 = vld [vmem:[#allocation5 + $0x56c] sm:$0xf]
    %v369 = vld [vmem:[#allocation5 + $0x570] sm:$0xff]
    %v370 = vld [vmem:[#allocation5 + $0x578] sm:$0xf]
    %v371 = vld [vmem:[#allocation5 + $0x57c] sm:$0xff]
    %v372 = vld [vmem:[#allocation5 + $0x584] sm:$0xf]
    %v373 = vld [vmem:[#allocation5 + $0x588] sm:$0xff]
    %v374 = vld [vmem:[#allocation5 + $0x590] sm:$0xf]
    %v375 = vld [vmem:[#allocation5 + $0x594] sm:$0xff]
    %v376 = vld [vmem:[#allocation5 + $0x59c] sm:$0xf]
    %v377 = vld [vmem:[#allocation5 + $0x5a0] sm:$0xff]
    %v378 = vld [vmem:[#allocation5 + $0x5a8] sm:$0xf]
    %v379 = vld [vmem:[#allocation5 + $0x5ac] sm:$0xff]
    %v380 = vld [vmem:[#allocation5 + $0x5b4] sm:$0xf]
    %v381 = vld [vmem:[#allocation5 + $0x5b8] sm:$0xff]
    %v382 = vld [vmem:[#allocation5 + $0x5c0] sm:$0xf]
    %v383 = vld [vmem:[#allocation5 + $0x5c4] sm:$0xff]
    %v384 = vld [vmem:[#allocation5 + $0x5cc] sm:$0xf]
    %v385 = vld [vmem:[#allocation5 + $0x5d0] sm:$0xff]
    %v386 = vld [vmem:[#allocation5 + $0x5d8] sm:$0xf]
    %v387 = vld [vmem:[#allocation5 + $0x5dc] sm:$0xff]
    %v388 = vld [vmem:[#allocation5 + $0x5e4] sm:$0xf]
    %v389 = vld [vmem:[#allocation5 + $0x5e8] sm:$0xff]
    %v390 = vld [vmem:[#allocation5 + $0x5f0] sm:$0xf]
    %v391 = vld [vmem:[#allocation5 + $0x5f4] sm:$0xff]
    %v392 = vld [vmem:[#allocation5 + $0x5fc] sm:$0xf]
    %v393 = vld [vmem:[#allocation5 + $0x600] sm:$0xff]
    %v394 = vld [vmem:[#allocation5 + $0x608] sm:$0xf]
    %v395 = vld [vmem:[#allocation5 + $0x60c] sm:$0xff]
    %v396 = vld [vmem:[#allocation5 + $0x614] sm:$0xf]
    %v397 = vld [vmem:[#allocation5 + $0x618] sm:$0xff]
    %v398 = vld [vmem:[#allocation5 + $0x620] sm:$0xf]
    %v399 = vld [vmem:[#allocation5 + $0x624] sm:$0xff]
    %v400 = vld [vmem:[#allocation5 + $0x62c] sm:$0xf]
    %v401 = vld [vmem:[#allocation5 + $0x630] sm:$0xff]
    %v402 = vld [vmem:[#allocation5 + $0x638] sm:$0xf]
    %v403 = vld [vmem:[#allocation5 + $0x63c] sm:$0xff]
    %v404 = vld [vmem:[#allocation5 + $0x644] sm:$0xf]
    %v405 = vld [vmem:[#allocation5 + $0x648] sm:$0xff]
    %v406 = vld [vmem:[#allocation5 + $0x650] sm:$0xf]
    %v407 = vld [vmem:[#allocation5 + $0x654] sm:$0xff]
    %v408 = vld [vmem:[#allocation5 + $0x65c] sm:$0xf]
    %v409 = vld [vmem:[#allocation5 + $0x660] sm:$0xff]
    %v410 = vld [vmem:[#allocation5 + $0x668] sm:$0xf]
    %v411 = vld [vmem:[#allocation5 + $0x66c] sm:$0xff]
    %v412 = vld [vmem:[#allocation5 + $0x674] sm:$0xf]
    %v413 = vld [vmem:[#allocation5 + $0x678] sm:$0xff]
    %v414 = vld [vmem:[#allocation5 + $0x680] sm:$0xf]
    %v415 = vld [vmem:[#allocation5 + $0x684] sm:$0xff]
    %v416 = vld [vmem:[#allocation5 + $0x68c] sm:$0xf]
    %v417 = vld [vmem:[#allocation5 + $0x690] sm:$0xff]
    %v418 = vld [vmem:[#allocation5 + $0x698] sm:$0xf]
    %v419 = vld [vmem:[#allocation5 + $0x69c] sm:$0xff]
    %v420 = vld [vmem:[#allocation5 + $0x6a4] sm:$0xf]
    %v421 = vld [vmem:[#allocation5 + $0x6a8] sm:$0xff]
    %v422 = vld [vmem:[#allocation5 + $0x6b0] sm:$0xf]
    %v423 = vld [vmem:[#allocation5 + $0x6b4] sm:$0xff]
    %v424 = vld [vmem:[#allocation5 + $0x6bc] sm:$0xf]
    %v425 = vld [vmem:[#allocation5 + $0x6c0] sm:$0xff]
    %v426 = vld [vmem:[#allocation5 + $0x6c8] sm:$0xf]
    %v427 = vld [vmem:[#allocation5 + $0x6cc] sm:$0xff]
    %v428 = vld [vmem:[#allocation5 + $0x6d4] sm:$0xf]
    %v429 = vld [vmem:[#allocation5 + $0x6d8] sm:$0xff]
    %v430 = vld [vmem:[#allocation5 + $0x6e0] sm:$0xf]
    %v431 = vld [vmem:[#allocation5 + $0x6e4] sm:$0xff]
    %v432 = vld [vmem:[#allocation5 + $0x6ec] sm:$0xf]
    %v433 = vld [vmem:[#allocation5 + $0x6f0] sm:$0xff]
    %v434 = vld [vmem:[#allocation5 + $0x6f8] sm:$0xf]
    %v435 = vld [vmem:[#allocation5 + $0x6fc] sm:$0xff]
    %v436 = vld [vmem:[#allocation5 + $0x704] sm:$0xf]
    %v437 = vld [vmem:[#allocation5 + $0x708] sm:$0xff]
    %v438 = vld [vmem:[#allocation5 + $0x710] sm:$0xf]
    %v439 = vld [vmem:[#allocation5 + $0x714] sm:$0xff]
    %v440 = vld [vmem:[#allocation5 + $0x71c] sm:$0xf]
    %v441 = vld [vmem:[#allocation5 + $0x720] sm:$0xff]
    %v442 = vld [vmem:[#allocation5 + $0x728] sm:$0xf]
    %v443 = vld [vmem:[#allocation5 + $0x72c] sm:$0xff]
    %v444 = vld [vmem:[#allocation5 + $0x734] sm:$0xf]
    %v445 = vld [vmem:[#allocation5 + $0x738] sm:$0xff]
    %v446 = vld [vmem:[#allocation5 + $0x740] sm:$0xf]
    %v447 = vld [vmem:[#allocation5 + $0x744] sm:$0xff]
    %v448 = vld [vmem:[#allocation5 + $0x74c] sm:$0xf]
    %v449 = vld [vmem:[#allocation5 + $0x750] sm:$0xff]
    %v450 = vld [vmem:[#allocation5 + $0x758] sm:$0xf]
    %v451 = vld [vmem:[#allocation5 + $0x75c] sm:$0xff]
    %v452 = vld [vmem:[#allocation5 + $0x764] sm:$0xf]
    %v453 = vld [vmem:[#allocation5 + $0x768] sm:$0xff]
    %v454 = vld [vmem:[#allocation5 + $0x770] sm:$0xf]
    %v455 = vld [vmem:[#allocation5 + $0x774] sm:$0xff]
    %v456 = vld [vmem:[#allocation5 + $0x77c] sm:$0xf]
    %v457 = vld [vmem:[#allocation5 + $0x780] sm:$0xff]
    %v458 = vld [vmem:[#allocation5 + $0x788] sm:$0xf]
    %v459 = vld [vmem:[#allocation5 + $0x78c] sm:$0xff]
    %v460 = vld [vmem:[#allocation5 + $0x794] sm:$0xf]
    %v461 = vld [vmem:[#allocation5 + $0x798] sm:$0xff]
    %v462 = vld [vmem:[#allocation5 + $0x7a0] sm:$0xf]
    %v463 = vld [vmem:[#allocation5 + $0x7a4] sm:$0xff]
    %v464 = vld [vmem:[#allocation5 + $0x7ac] sm:$0xf]
    %v465 = vld [vmem:[#allocation5 + $0x7b0] sm:$0xff]
    %v466 = vld [vmem:[#allocation5 + $0x7b8] sm:$0xf]
    %v467 = vld [vmem:[#allocation5 + $0x7bc] sm:$0xff]
    %v468 = vld [vmem:[#allocation5 + $0x7c4] sm:$0xf]
    %v469 = vld [vmem:[#allocation5 + $0x7c8] sm:$0xff]
    %v470 = vld [vmem:[#allocation5 + $0x7d0] sm:$0xf]
    %v471 = vld [vmem:[#allocation5 + $0x7d4] sm:$0xff]
    %v472 = vld [vmem:[#allocation5 + $0x7dc] sm:$0xf]
    %v473 = vld [vmem:[#allocation5 + $0x7e0] sm:$0xff]
    %v474 = vld [vmem:[#allocation5 + $0x7e8] sm:$0xf]
    %v475 = vld [vmem:[#allocation5 + $0x7ec] sm:$0xff]
    %v476 = vld [vmem:[#allocation5 + $0x7f4] sm:$0xf]
    %v477 = vld [vmem:[#allocation5 + $0x7f8] sm:$0xff]
    %v478 = vld [vmem:[#allocation5 + $0x800] sm:$0xf]
    %v479 = vld [vmem:[#allocation5 + $0x804] sm:$0xff]
    %v480 = vld [vmem:[#allocation5 + $0x80c] sm:$0xf]
    %v481 = vld [vmem:[#allocation5 + $0x810] sm:$0xff]
    %v482 = vld [vmem:[#allocation5 + $0x818] sm:$0xf]
    %v483 = vld [vmem:[#allocation5 + $0x81c] sm:$0xff]
    %v484 = vld [vmem:[#allocation5 + $0x824] sm:$0xf]
    %v485 = vld [vmem:[#allocation5 + $0x828] sm:$0xff]
    %v486 = vld [vmem:[#allocation5 + $0x830] sm:$0xf]
    %v487 = vld [vmem:[#allocation5 + $0x834] sm:$0xff]
    %v488 = vld [vmem:[#allocation5 + $0x83c] sm:$0xf]
    %v489 = vld [vmem:[#allocation5 + $0x840] sm:$0xff]
    %v490 = vld [vmem:[#allocation5 + $0x848] sm:$0xf]
    %v491 = vld [vmem:[#allocation5 + $0x84c] sm:$0xff]
    %v492 = vld [vmem:[#allocation5 + $0x854] sm:$0xf]
    %v493 = vld [vmem:[#allocation5 + $0x858] sm:$0xff]
    %v494 = vld [vmem:[#allocation5 + $0x860] sm:$0xf]
    %v495 = vld [vmem:[#allocation5 + $0x864] sm:$0xff]
    %v496 = vld [vmem:[#allocation5 + $0x86c] sm:$0xf]
    %v497 = vld [vmem:[#allocation5 + $0x870] sm:$0xff]
    %v498 = vld [vmem:[#allocation5 + $0x878] sm:$0xf]
    %v499 = vld [vmem:[#allocation5 + $0x87c] sm:$0xff]
    %v500 = vld [vmem:[#allocation5 + $0x884] sm:$0xf]
    %v501 = vld [vmem:[#allocation5 + $0x888] sm:$0xff]
    %v502 = vld [vmem:[#allocation5 + $0x890] sm:$0xf]
    %v503 = vld [vmem:[#allocation5 + $0x894] sm:$0xff]
    %v504 = vld [vmem:[#allocation5 + $0x89c] sm:$0xf]
    %v505 = vld [vmem:[#allocation5 + $0x8a0] sm:$0xff]
    %v506 = vld [vmem:[#allocation5 + $0x8a8] sm:$0xf]
    %v507 = vld [vmem:[#allocation5 + $0x8ac] sm:$0xff]
    %v508 = vld [vmem:[#allocation5 + $0x8b4] sm:$0xf]
    %v509 = vld [vmem:[#allocation5 + $0x8b8] sm:$0xff]
    %v510 = vld [vmem:[#allocation5 + $0x8c0] sm:$0xf]
    %v511 = vld [vmem:[#allocation5 + $0x8c4] sm:$0xff]
    %v512 = vld [vmem:[#allocation5 + $0x8cc] sm:$0xf]
    %v513 = vld [vmem:[#allocation5 + $0x8d0] sm:$0xff]
    %v514 = vld [vmem:[#allocation5 + $0x8d8] sm:$0xf]
    %v515 = vld [vmem:[#allocation5 + $0x8dc] sm:$0xff]
    %v516 = vld [vmem:[#allocation5 + $0x8e4] sm:$0xf]
    %v517 = vld [vmem:[#allocation5 + $0x8e8] sm:$0xff]
    %v518 = vld [vmem:[#allocation5 + $0x8f0] sm:$0xf]
    %v519 = vld [vmem:[#allocation5 + $0x8f4] sm:$0xff]
    %v520 = vld [vmem:[#allocation5 + $0x8fc] sm:$0xf]
    %v521 = vld [vmem:[#allocation7] sm:$0x7]
    %v523 = vlaneseq
    %v524 = vshrl.u32 %v523, 7
    %v525 = vsub.s32 0, %v524
    %v526 = vrot.slane %v521, %v525
    %v527 = vlaneseq
    %v528 = vshrl.u32 %v527, 7
    %v529 = vsub.s32 1, %v528
    %v530 = vrot.slane %v521, %v529
    %v531 = vlaneseq
    %v532 = vshrl.u32 %v531, 7
    %v533 = vsub.s32 2, %v532
    %v534 = vrot.slane %v521, %v533
    %v922 = vunpack.c.l.b16 %v137
    %v923 = vunpack.c.h.b16 %v137
    %v924 = vunpack.c.l.b16 %v138
    %v925 = vunpack.c.l.b16 %v139
    %v926 = vunpack.c.h.b16 %v139
    %v927 = vunpack.c.l.b16 %v140
    %v928 = vunpack.c.l.b16 %v141
    %v929 = vunpack.c.h.b16 %v141
    %v930 = vunpack.c.l.b16 %v142
    %v931 = vunpack.c.l.b16 %v143
    %v932 = vunpack.c.h.b16 %v143
    %v933 = vunpack.c.l.b16 %v144
    %v934 = vunpack.c.l.b16 %v145
    %v935 = vunpack.c.h.b16 %v145
    %v936 = vunpack.c.l.b16 %v146
    %v937 = vunpack.c.l.b16 %v147
    %v938 = vunpack.c.h.b16 %v147
    %v939 = vunpack.c.l.b16 %v148
    %v940 = vunpack.c.l.b16 %v149
    %v941 = vunpack.c.h.b16 %v149
    %v942 = vunpack.c.l.b16 %v150
    %v943 = vunpack.c.l.b16 %v151
    %v944 = vunpack.c.h.b16 %v151
    %v945 = vunpack.c.l.b16 %v152
    %v946 = vunpack.c.l.b16 %v153
    %v947 = vunpack.c.h.b16 %v153
    %v948 = vunpack.c.l.b16 %v154
    %v949 = vunpack.c.l.b16 %v155
    %v950 = vunpack.c.h.b16 %v155
    %v951 = vunpack.c.l.b16 %v156
    %v952 = vunpack.c.l.b16 %v157
    %v953 = vunpack.c.h.b16 %v157
    %v954 = vunpack.c.l.b16 %v158
    %v955 = vunpack.c.l.b16 %v159
    %v956 = vunpack.c.h.b16 %v159
    %v957 = vunpack.c.l.b16 %v160
    %v958 = vunpack.c.l.b16 %v161
    %v959 = vunpack.c.h.b16 %v161
    %v960 = vunpack.c.l.b16 %v162
    %v961 = vunpack.c.l.b16 %v163
    %v962 = vunpack.c.h.b16 %v163
    %v963 = vunpack.c.l.b16 %v164
    %v964 = vunpack.c.l.b16 %v165
    %v965 = vunpack.c.h.b16 %v165
    %v966 = vunpack.c.l.b16 %v166
    %v967 = vunpack.c.l.b16 %v167
    %v968 = vunpack.c.h.b16 %v167
    %v969 = vunpack.c.l.b16 %v168
    %v970 = vunpack.c.l.b16 %v169
    %v971 = vunpack.c.h.b16 %v169
    %v972 = vunpack.c.l.b16 %v170
    %v973 = vunpack.c.l.b16 %v171
    %v974 = vunpack.c.h.b16 %v171
    %v975 = vunpack.c.l.b16 %v172
    %v976 = vunpack.c.l.b16 %v173
    %v977 = vunpack.c.h.b16 %v173
    %v978 = vunpack.c.l.b16 %v174
    %v979 = vunpack.c.l.b16 %v175
    %v980 = vunpack.c.h.b16 %v175
    %v981 = vunpack.c.l.b16 %v176
    %v982 = vunpack.c.l.b16 %v177
    %v983 = vunpack.c.h.b16 %v177
    %v984 = vunpack.c.l.b16 %v178
    %v985 = vunpack.c.l.b16 %v179
    %v986 = vunpack.c.h.b16 %v179
    %v987 = vunpack.c.l.b16 %v180
    %v988 = vunpack.c.l.b16 %v181
    %v989 = vunpack.c.h.b16 %v181
    %v990 = vunpack.c.l.b16 %v182
    %v991 = vunpack.c.l.b16 %v183
    %v992 = vunpack.c.h.b16 %v183
    %v993 = vunpack.c.l.b16 %v184
    %v994 = vunpack.c.l.b16 %v185
    %v995 = vunpack.c.h.b16 %v185
    %v996 = vunpack.c.l.b16 %v186
    %v997 = vunpack.c.l.b16 %v187
    %v998 = vunpack.c.h.b16 %v187
    %v999 = vunpack.c.l.b16 %v188
    %v1000 = vunpack.c.l.b16 %v189
    %v1001 = vunpack.c.h.b16 %v189
    %v1002 = vunpack.c.l.b16 %v190
    %v1003 = vunpack.c.l.b16 %v191
    %v1004 = vunpack.c.h.b16 %v191
    %v1005 = vunpack.c.l.b16 %v192
    %v1006 = vunpack.c.l.b16 %v193
    %v1007 = vunpack.c.h.b16 %v193
    %v1008 = vunpack.c.l.b16 %v194
    %v1009 = vunpack.c.l.b16 %v195
    %v1010 = vunpack.c.h.b16 %v195
    %v1011 = vunpack.c.l.b16 %v196
    %v1012 = vunpack.c.l.b16 %v197
    %v1013 = vunpack.c.h.b16 %v197
    %v1014 = vunpack.c.l.b16 %v198
    %v1015 = vunpack.c.l.b16 %v199
    %v1016 = vunpack.c.h.b16 %v199
    %v1017 = vunpack.c.l.b16 %v200
    %v1018 = vunpack.c.l.b16 %v201
    %v1019 = vunpack.c.h.b16 %v201
    %v1020 = vunpack.c.l.b16 %v202
    %v1021 = vunpack.c.l.b16 %v203
    %v1022 = vunpack.c.h.b16 %v203
    %v1023 = vunpack.c.l.b16 %v204
    %v1024 = vunpack.c.l.b16 %v205
    %v1025 = vunpack.c.h.b16 %v205
    %v1026 = vunpack.c.l.b16 %v206
    %v1027 = vunpack.c.l.b16 %v207
    %v1028 = vunpack.c.h.b16 %v207
    %v1029 = vunpack.c.l.b16 %v208
    %v1030 = vunpack.c.l.b16 %v209
    %v1031 = vunpack.c.h.b16 %v209
    %v1032 = vunpack.c.l.b16 %v210
    %v1033 = vunpack.c.l.b16 %v211
    %v1034 = vunpack.c.h.b16 %v211
    %v1035 = vunpack.c.l.b16 %v212
    %v1036 = vunpack.c.l.b16 %v213
    %v1037 = vunpack.c.h.b16 %v213
    %v1038 = vunpack.c.l.b16 %v214
    %v1039 = vunpack.c.l.b16 %v215
    %v1040 = vunpack.c.h.b16 %v215
    %v1041 = vunpack.c.l.b16 %v216
    %v1042 = vunpack.c.l.b16 %v217
    %v1043 = vunpack.c.h.b16 %v217
    %v1044 = vunpack.c.l.b16 %v218
    %v1045 = vunpack.c.l.b16 %v219
    %v1046 = vunpack.c.h.b16 %v219
    %v1047 = vunpack.c.l.b16 %v220
    %v1048 = vunpack.c.l.b16 %v221
    %v1049 = vunpack.c.h.b16 %v221
    %v1050 = vunpack.c.l.b16 %v222
    %v1051 = vunpack.c.l.b16 %v223
    %v1052 = vunpack.c.h.b16 %v223
    %v1053 = vunpack.c.l.b16 %v224
    %v1054 = vunpack.c.l.b16 %v225
    %v1055 = vunpack.c.h.b16 %v225
    %v1056 = vunpack.c.l.b16 %v226
    %v1057 = vunpack.c.l.b16 %v227
    %v1058 = vunpack.c.h.b16 %v227
    %v1059 = vunpack.c.l.b16 %v228
    %v1060 = vunpack.c.l.b16 %v229
    %v1061 = vunpack.c.h.b16 %v229
    %v1062 = vunpack.c.l.b16 %v230
    %v1063 = vunpack.c.l.b16 %v231
    %v1064 = vunpack.c.h.b16 %v231
    %v1065 = vunpack.c.l.b16 %v232
    %v1066 = vunpack.c.l.b16 %v233
    %v1067 = vunpack.c.h.b16 %v233
    %v1068 = vunpack.c.l.b16 %v234
    %v1069 = vunpack.c.l.b16 %v235
    %v1070 = vunpack.c.h.b16 %v235
    %v1071 = vunpack.c.l.b16 %v236
    %v1072 = vunpack.c.l.b16 %v237
    %v1073 = vunpack.c.h.b16 %v237
    %v1074 = vunpack.c.l.b16 %v238
    %v1075 = vunpack.c.l.b16 %v239
    %v1076 = vunpack.c.h.b16 %v239
    %v1077 = vunpack.c.l.b16 %v240
    %v1078 = vunpack.c.l.b16 %v241
    %v1079 = vunpack.c.h.b16 %v241
    %v1080 = vunpack.c.l.b16 %v242
    %v1081 = vunpack.c.l.b16 %v243
    %v1082 = vunpack.c.h.b16 %v243
    %v1083 = vunpack.c.l.b16 %v244
    %v1084 = vunpack.c.l.b16 %v245
    %v1085 = vunpack.c.h.b16 %v245
    %v1086 = vunpack.c.l.b16 %v246
    %v1087 = vunpack.c.l.b16 %v247
    %v1088 = vunpack.c.h.b16 %v247
    %v1089 = vunpack.c.l.b16 %v248
    %v1090 = vunpack.c.l.b16 %v249
    %v1091 = vunpack.c.h.b16 %v249
    %v1092 = vunpack.c.l.b16 %v250
    %v1093 = vunpack.c.l.b16 %v251
    %v1094 = vunpack.c.h.b16 %v251
    %v1095 = vunpack.c.l.b16 %v252
    %v1096 = vunpack.c.l.b16 %v253
    %v1097 = vunpack.c.h.b16 %v253
    %v1098 = vunpack.c.l.b16 %v254
    %v1099 = vunpack.c.l.b16 %v255
    %v1100 = vunpack.c.h.b16 %v255
    %v1101 = vunpack.c.l.b16 %v256
    %v1102 = vunpack.c.l.b16 %v257
    %v1103 = vunpack.c.h.b16 %v257
    %v1104 = vunpack.c.l.b16 %v258
    %v1105 = vunpack.c.l.b16 %v259
    %v1106 = vunpack.c.h.b16 %v259
    %v1107 = vunpack.c.l.b16 %v260
    %v1108 = vunpack.c.l.b16 %v261
    %v1109 = vunpack.c.h.b16 %v261
    %v1110 = vunpack.c.l.b16 %v262
    %v1111 = vunpack.c.l.b16 %v263
    %v1112 = vunpack.c.h.b16 %v263
    %v1113 = vunpack.c.l.b16 %v264
    %v1114 = vunpack.c.l.b16 %v265
    %v1115 = vunpack.c.h.b16 %v265
    %v1116 = vunpack.c.l.b16 %v266
    %v1117 = vunpack.c.l.b16 %v267
    %v1118 = vunpack.c.h.b16 %v267
    %v1119 = vunpack.c.l.b16 %v268
    %v1120 = vunpack.c.l.b16 %v269
    %v1121 = vunpack.c.h.b16 %v269
    %v1122 = vunpack.c.l.b16 %v270
    %v1123 = vunpack.c.l.b16 %v271
    %v1124 = vunpack.c.h.b16 %v271
    %v1125 = vunpack.c.l.b16 %v272
    %v1126 = vunpack.c.l.b16 %v273
    %v1127 = vunpack.c.h.b16 %v273
    %v1128 = vunpack.c.l.b16 %v274
    %v1129 = vunpack.c.l.b16 %v275
    %v1130 = vunpack.c.h.b16 %v275
    %v1131 = vunpack.c.l.b16 %v276
    %v1132 = vunpack.c.l.b16 %v277
    %v1133 = vunpack.c.h.b16 %v277
    %v1134 = vunpack.c.l.b16 %v278
    %v1135 = vunpack.c.l.b16 %v279
    %v1136 = vunpack.c.h.b16 %v279
    %v1137 = vunpack.c.l.b16 %v280
    %v1138 = vunpack.c.l.b16 %v281
    %v1139 = vunpack.c.h.b16 %v281
    %v1140 = vunpack.c.l.b16 %v282
    %v1141 = vunpack.c.l.b16 %v283
    %v1142 = vunpack.c.h.b16 %v283
    %v1143 = vunpack.c.l.b16 %v284
    %v1144 = vunpack.c.l.b16 %v285
    %v1145 = vunpack.c.h.b16 %v285
    %v1146 = vunpack.c.l.b16 %v286
    %v1147 = vunpack.c.l.b16 %v287
    %v1148 = vunpack.c.h.b16 %v287
    %v1149 = vunpack.c.l.b16 %v288
    %v1150 = vunpack.c.l.b16 %v289
    %v1151 = vunpack.c.h.b16 %v289
    %v1152 = vunpack.c.l.b16 %v290
    %v1153 = vunpack.c.l.b16 %v291
    %v1154 = vunpack.c.h.b16 %v291
    %v1155 = vunpack.c.l.b16 %v292
    %v1156 = vunpack.c.l.b16 %v293
    %v1157 = vunpack.c.h.b16 %v293
    %v1158 = vunpack.c.l.b16 %v294
    %v1159 = vunpack.c.l.b16 %v295
    %v1160 = vunpack.c.h.b16 %v295
    %v1161 = vunpack.c.l.b16 %v296
    %v1162 = vunpack.c.l.b16 %v297
    %v1163 = vunpack.c.h.b16 %v297
    %v1164 = vunpack.c.l.b16 %v298
    %v1165 = vunpack.c.l.b16 %v299
    %v1166 = vunpack.c.h.b16 %v299
    %v1167 = vunpack.c.l.b16 %v300
    %v1168 = vunpack.c.l.b16 %v301
    %v1169 = vunpack.c.h.b16 %v301
    %v1170 = vunpack.c.l.b16 %v302
    %v1171 = vunpack.c.l.b16 %v303
    %v1172 = vunpack.c.h.b16 %v303
    %v1173 = vunpack.c.l.b16 %v304
    %v1174 = vunpack.c.l.b16 %v305
    %v1175 = vunpack.c.h.b16 %v305
    %v1176 = vunpack.c.l.b16 %v306
    %v1177 = vunpack.c.l.b16 %v307
    %v1178 = vunpack.c.h.b16 %v307
    %v1179 = vunpack.c.l.b16 %v308
    %v1180 = vunpack.c.l.b16 %v309
    %v1181 = vunpack.c.h.b16 %v309
    %v1182 = vunpack.c.l.b16 %v310
    %v1183 = vunpack.c.l.b16 %v311
    %v1184 = vunpack.c.h.b16 %v311
    %v1185 = vunpack.c.l.b16 %v312
    %v1186 = vunpack.c.l.b16 %v313
    %v1187 = vunpack.c.h.b16 %v313
    %v1188 = vunpack.c.l.b16 %v314
    %v1189 = vunpack.c.l.b16 %v315
    %v1190 = vunpack.c.h.b16 %v315
    %v1191 = vunpack.c.l.b16 %v316
    %v1192 = vunpack.c.l.b16 %v317
    %v1193 = vunpack.c.h.b16 %v317
    %v1194 = vunpack.c.l.b16 %v318
    %v1195 = vunpack.c.l.b16 %v319
    %v1196 = vunpack.c.h.b16 %v319
    %v1197 = vunpack.c.l.b16 %v320
    %v1198 = vunpack.c.l.b16 %v321
    %v1199 = vunpack.c.h.b16 %v321
    %v1200 = vunpack.c.l.b16 %v322
    %v1201 = vunpack.c.l.b16 %v323
    %v1202 = vunpack.c.h.b16 %v323
    %v1203 = vunpack.c.l.b16 %v324
    %v1204 = vunpack.c.l.b16 %v325
    %v1205 = vunpack.c.h.b16 %v325
    %v1206 = vunpack.c.l.b16 %v326
    %v1207 = vunpack.c.l.b16 %v327
    %v1208 = vunpack.c.h.b16 %v327
    %v1209 = vunpack.c.l.b16 %v328
    %v1210 = vunpack.c.l.b16 %v329
    %v1211 = vunpack.c.h.b16 %v329
    %v1212 = vunpack.c.l.b16 %v330
    %v1213 = vunpack.c.l.b16 %v331
    %v1214 = vunpack.c.h.b16 %v331
    %v1215 = vunpack.c.l.b16 %v332
    %v1216 = vunpack.c.l.b16 %v333
    %v1217 = vunpack.c.h.b16 %v333
    %v1218 = vunpack.c.l.b16 %v334
    %v1219 = vunpack.c.l.b16 %v335
    %v1220 = vunpack.c.h.b16 %v335
    %v1221 = vunpack.c.l.b16 %v336
    %v1222 = vunpack.c.l.b16 %v337
    %v1223 = vunpack.c.h.b16 %v337
    %v1224 = vunpack.c.l.b16 %v338
    %v1225 = vunpack.c.l.b16 %v339
    %v1226 = vunpack.c.h.b16 %v339
    %v1227 = vunpack.c.l.b16 %v340
    %v1228 = vunpack.c.l.b16 %v341
    %v1229 = vunpack.c.h.b16 %v341
    %v1230 = vunpack.c.l.b16 %v342
    %v1231 = vunpack.c.l.b16 %v343
    %v1232 = vunpack.c.h.b16 %v343
    %v1233 = vunpack.c.l.b16 %v344
    %v1234 = vunpack.c.l.b16 %v345
    %v1235 = vunpack.c.h.b16 %v345
    %v1236 = vunpack.c.l.b16 %v346
    %v1237 = vunpack.c.l.b16 %v347
    %v1238 = vunpack.c.h.b16 %v347
    %v1239 = vunpack.c.l.b16 %v348
    %v1240 = vunpack.c.l.b16 %v349
    %v1241 = vunpack.c.h.b16 %v349
    %v1242 = vunpack.c.l.b16 %v350
    %v1243 = vunpack.c.l.b16 %v351
    %v1244 = vunpack.c.h.b16 %v351
    %v1245 = vunpack.c.l.b16 %v352
    %v1246 = vunpack.c.l.b16 %v353
    %v1247 = vunpack.c.h.b16 %v353
    %v1248 = vunpack.c.l.b16 %v354
    %v1249 = vunpack.c.l.b16 %v355
    %v1250 = vunpack.c.h.b16 %v355
    %v1251 = vunpack.c.l.b16 %v356
    %v1252 = vunpack.c.l.b16 %v357
    %v1253 = vunpack.c.h.b16 %v357
    %v1254 = vunpack.c.l.b16 %v358
    %v1255 = vunpack.c.l.b16 %v359
    %v1256 = vunpack.c.h.b16 %v359
    %v1257 = vunpack.c.l.b16 %v360
    %v1258 = vunpack.c.l.b16 %v361
    %v1259 = vunpack.c.h.b16 %v361
    %v1260 = vunpack.c.l.b16 %v362
    %v1261 = vunpack.c.l.b16 %v363
    %v1262 = vunpack.c.h.b16 %v363
    %v1263 = vunpack.c.l.b16 %v364
    %v1264 = vunpack.c.l.b16 %v365
    %v1265 = vunpack.c.h.b16 %v365
    %v1266 = vunpack.c.l.b16 %v366
    %v1267 = vunpack.c.l.b16 %v367
    %v1268 = vunpack.c.h.b16 %v367
    %v1269 = vunpack.c.l.b16 %v368
    %v1270 = vunpack.c.l.b16 %v369
    %v1271 = vunpack.c.h.b16 %v369
    %v1272 = vunpack.c.l.b16 %v370
    %v1273 = vunpack.c.l.b16 %v371
    %v1274 = vunpack.c.h.b16 %v371
    %v1275 = vunpack.c.l.b16 %v372
    %v1276 = vunpack.c.l.b16 %v373
    %v1277 = vunpack.c.h.b16 %v373
    %v1278 = vunpack.c.l.b16 %v374
    %v1279 = vunpack.c.l.b16 %v375
    %v1280 = vunpack.c.h.b16 %v375
    %v1281 = vunpack.c.l.b16 %v376
    %v1282 = vunpack.c.l.b16 %v377
    %v1283 = vunpack.c.h.b16 %v377
    %v1284 = vunpack.c.l.b16 %v378
    %v1285 = vunpack.c.l.b16 %v379
    %v1286 = vunpack.c.h.b16 %v379
    %v1287 = vunpack.c.l.b16 %v380
    %v1288 = vunpack.c.l.b16 %v381
    %v1289 = vunpack.c.h.b16 %v381
    %v1290 = vunpack.c.l.b16 %v382
    %v1291 = vunpack.c.l.b16 %v383
    %v1292 = vunpack.c.h.b16 %v383
    %v1293 = vunpack.c.l.b16 %v384
    %v1294 = vunpack.c.l.b16 %v385
    %v1295 = vunpack.c.h.b16 %v385
    %v1296 = vunpack.c.l.b16 %v386
    %v1297 = vunpack.c.l.b16 %v387
    %v1298 = vunpack.c.h.b16 %v387
    %v1299 = vunpack.c.l.b16 %v388
    %v1300 = vunpack.c.l.b16 %v389
    %v1301 = vunpack.c.h.b16 %v389
    %v1302 = vunpack.c.l.b16 %v390
    %v1303 = vunpack.c.l.b16 %v391
    %v1304 = vunpack.c.h.b16 %v391
    %v1305 = vunpack.c.l.b16 %v392
    %v1306 = vunpack.c.l.b16 %v393
    %v1307 = vunpack.c.h.b16 %v393
    %v1308 = vunpack.c.l.b16 %v394
    %v1309 = vunpack.c.l.b16 %v395
    %v1310 = vunpack.c.h.b16 %v395
    %v1311 = vunpack.c.l.b16 %v396
    %v1312 = vunpack.c.l.b16 %v397
    %v1313 = vunpack.c.h.b16 %v397
    %v1314 = vunpack.c.l.b16 %v398
    %v1315 = vunpack.c.l.b16 %v399
    %v1316 = vunpack.c.h.b16 %v399
    %v1317 = vunpack.c.l.b16 %v400
    %v1318 = vunpack.c.l.b16 %v401
    %v1319 = vunpack.c.h.b16 %v401
    %v1320 = vunpack.c.l.b16 %v402
    %v1321 = vunpack.c.l.b16 %v403
    %v1322 = vunpack.c.h.b16 %v403
    %v1323 = vunpack.c.l.b16 %v404
    %v1324 = vunpack.c.l.b16 %v405
    %v1325 = vunpack.c.h.b16 %v405
    %v1326 = vunpack.c.l.b16 %v406
    %v1327 = vunpack.c.l.b16 %v407
    %v1328 = vunpack.c.h.b16 %v407
    %v1329 = vunpack.c.l.b16 %v408
    %v1330 = vunpack.c.l.b16 %v409
    %v1331 = vunpack.c.h.b16 %v409
    %v1332 = vunpack.c.l.b16 %v410
    %v1333 = vunpack.c.l.b16 %v411
    %v1334 = vunpack.c.h.b16 %v411
    %v1335 = vunpack.c.l.b16 %v412
    %v1336 = vunpack.c.l.b16 %v413
    %v1337 = vunpack.c.h.b16 %v413
    %v1338 = vunpack.c.l.b16 %v414
    %v1339 = vunpack.c.l.b16 %v415
    %v1340 = vunpack.c.h.b16 %v415
    %v1341 = vunpack.c.l.b16 %v416
    %v1342 = vunpack.c.l.b16 %v417
    %v1343 = vunpack.c.h.b16 %v417
    %v1344 = vunpack.c.l.b16 %v418
    %v1345 = vunpack.c.l.b16 %v419
    %v1346 = vunpack.c.h.b16 %v419
    %v1347 = vunpack.c.l.b16 %v420
    %v1348 = vunpack.c.l.b16 %v421
    %v1349 = vunpack.c.h.b16 %v421
    %v1350 = vunpack.c.l.b16 %v422
    %v1351 = vunpack.c.l.b16 %v423
    %v1352 = vunpack.c.h.b16 %v423
    %v1353 = vunpack.c.l.b16 %v424
    %v1354 = vunpack.c.l.b16 %v425
    %v1355 = vunpack.c.h.b16 %v425
    %v1356 = vunpack.c.l.b16 %v426
    %v1357 = vunpack.c.l.b16 %v427
    %v1358 = vunpack.c.h.b16 %v427
    %v1359 = vunpack.c.l.b16 %v428
    %v1360 = vunpack.c.l.b16 %v429
    %v1361 = vunpack.c.h.b16 %v429
    %v1362 = vunpack.c.l.b16 %v430
    %v1363 = vunpack.c.l.b16 %v431
    %v1364 = vunpack.c.h.b16 %v431
    %v1365 = vunpack.c.l.b16 %v432
    %v1366 = vunpack.c.l.b16 %v433
    %v1367 = vunpack.c.h.b16 %v433
    %v1368 = vunpack.c.l.b16 %v434
    %v1369 = vunpack.c.l.b16 %v435
    %v1370 = vunpack.c.h.b16 %v435
    %v1371 = vunpack.c.l.b16 %v436
    %v1372 = vunpack.c.l.b16 %v437
    %v1373 = vunpack.c.h.b16 %v437
    %v1374 = vunpack.c.l.b16 %v438
    %v1375 = vunpack.c.l.b16 %v439
    %v1376 = vunpack.c.h.b16 %v439
    %v1377 = vunpack.c.l.b16 %v440
    %v1378 = vunpack.c.l.b16 %v441
    %v1379 = vunpack.c.h.b16 %v441
    %v1380 = vunpack.c.l.b16 %v442
    %v1381 = vunpack.c.l.b16 %v443
    %v1382 = vunpack.c.h.b16 %v443
    %v1383 = vunpack.c.l.b16 %v444
    %v1384 = vunpack.c.l.b16 %v445
    %v1385 = vunpack.c.h.b16 %v445
    %v1386 = vunpack.c.l.b16 %v446
    %v1387 = vunpack.c.l.b16 %v447
    %v1388 = vunpack.c.h.b16 %v447
    %v1389 = vunpack.c.l.b16 %v448
    %v1390 = vunpack.c.l.b16 %v449
    %v1391 = vunpack.c.h.b16 %v449
    %v1392 = vunpack.c.l.b16 %v450
    %v1393 = vunpack.c.l.b16 %v451
    %v1394 = vunpack.c.h.b16 %v451
    %v1395 = vunpack.c.l.b16 %v452
    %v1396 = vunpack.c.l.b16 %v453
    %v1397 = vunpack.c.h.b16 %v453
    %v1398 = vunpack.c.l.b16 %v454
    %v1399 = vunpack.c.l.b16 %v455
    %v1400 = vunpack.c.h.b16 %v455
    %v1401 = vunpack.c.l.b16 %v456
    %v1402 = vunpack.c.l.b16 %v457
    %v1403 = vunpack.c.h.b16 %v457
    %v1404 = vunpack.c.l.b16 %v458
    %v1405 = vunpack.c.l.b16 %v459
    %v1406 = vunpack.c.h.b16 %v459
    %v1407 = vunpack.c.l.b16 %v460
    %v1408 = vunpack.c.l.b16 %v461
    %v1409 = vunpack.c.h.b16 %v461
    %v1410 = vunpack.c.l.b16 %v462
    %v1411 = vunpack.c.l.b16 %v463
    %v1412 = vunpack.c.h.b16 %v463
    %v1413 = vunpack.c.l.b16 %v464
    %v1414 = vunpack.c.l.b16 %v465
    %v1415 = vunpack.c.h.b16 %v465
    %v1416 = vunpack.c.l.b16 %v466
    %v1417 = vunpack.c.l.b16 %v467
    %v1418 = vunpack.c.h.b16 %v467
    %v1419 = vunpack.c.l.b16 %v468
    %v1420 = vunpack.c.l.b16 %v469
    %v1421 = vunpack.c.h.b16 %v469
    %v1422 = vunpack.c.l.b16 %v470
    %v1423 = vunpack.c.l.b16 %v471
    %v1424 = vunpack.c.h.b16 %v471
    %v1425 = vunpack.c.l.b16 %v472
    %v1426 = vunpack.c.l.b16 %v473
    %v1427 = vunpack.c.h.b16 %v473
    %v1428 = vunpack.c.l.b16 %v474
    %v1429 = vunpack.c.l.b16 %v475
    %v1430 = vunpack.c.h.b16 %v475
    %v1431 = vunpack.c.l.b16 %v476
    %v1432 = vunpack.c.l.b16 %v477
    %v1433 = vunpack.c.h.b16 %v477
    %v1434 = vunpack.c.l.b16 %v478
    %v1435 = vunpack.c.l.b16 %v479
    %v1436 = vunpack.c.h.b16 %v479
    %v1437 = vunpack.c.l.b16 %v480
    %v1438 = vunpack.c.l.b16 %v481
    %v1439 = vunpack.c.h.b16 %v481
    %v1440 = vunpack.c.l.b16 %v482
    %v1441 = vunpack.c.l.b16 %v483
    %v1442 = vunpack.c.h.b16 %v483
    %v1443 = vunpack.c.l.b16 %v484
    %v1444 = vunpack.c.l.b16 %v485
    %v1445 = vunpack.c.h.b16 %v485
    %v1446 = vunpack.c.l.b16 %v486
    %v1447 = vunpack.c.l.b16 %v487
    %v1448 = vunpack.c.h.b16 %v487
    %v1449 = vunpack.c.l.b16 %v488
    %v1450 = vunpack.c.l.b16 %v489
    %v1451 = vunpack.c.h.b16 %v489
    %v1452 = vunpack.c.l.b16 %v490
    %v1453 = vunpack.c.l.b16 %v491
    %v1454 = vunpack.c.h.b16 %v491
    %v1455 = vunpack.c.l.b16 %v492
    %v1456 = vunpack.c.l.b16 %v493
    %v1457 = vunpack.c.h.b16 %v493
    %v1458 = vunpack.c.l.b16 %v494
    %v1459 = vunpack.c.l.b16 %v495
    %v1460 = vunpack.c.h.b16 %v495
    %v1461 = vunpack.c.l.b16 %v496
    %v1462 = vunpack.c.l.b16 %v497
    %v1463 = vunpack.c.h.b16 %v497
    %v1464 = vunpack.c.l.b16 %v498
    %v1465 = vunpack.c.l.b16 %v499
    %v1466 = vunpack.c.h.b16 %v499
    %v1467 = vunpack.c.l.b16 %v500
    %v1468 = vunpack.c.l.b16 %v501
    %v1469 = vunpack.c.h.b16 %v501
    %v1470 = vunpack.c.l.b16 %v502
    %v1471 = vunpack.c.l.b16 %v503
    %v1472 = vunpack.c.h.b16 %v503
    %v1473 = vunpack.c.l.b16 %v504
    %v1474 = vunpack.c.l.b16 %v505
    %v1475 = vunpack.c.h.b16 %v505
    %v1476 = vunpack.c.l.b16 %v506
    %v1477 = vunpack.c.l.b16 %v507
    %v1478 = vunpack.c.h.b16 %v507
    %v1479 = vunpack.c.l.b16 %v508
    %v1480 = vunpack.c.l.b16 %v509
    %v1481 = vunpack.c.h.b16 %v509
    %v1482 = vunpack.c.l.b16 %v510
    %v1483 = vunpack.c.l.b16 %v511
    %v1484 = vunpack.c.h.b16 %v511
    %v1485 = vunpack.c.l.b16 %v512
    %v1486 = vunpack.c.l.b16 %v513
    %v1487 = vunpack.c.h.b16 %v513
    %v1488 = vunpack.c.l.b16 %v514
    %v1489 = vunpack.c.l.b16 %v515
    %v1490 = vunpack.c.h.b16 %v515
    %v1491 = vunpack.c.l.b16 %v516
    %v1492 = vunpack.c.l.b16 %v517
    %v1493 = vunpack.c.h.b16 %v517
    %v1494 = vunpack.c.l.b16 %v518
    %v1495 = vunpack.c.l.b16 %v519
    %v1496 = vunpack.c.h.b16 %v519
    %v1497 = vunpack.c.l.b16 %v520
    %v1498 = vpack.c.b16 %v925, %v922
    %v1499 = vpack.c.b16 %v926, %v923
    %v1500 = vpack.c.b16 %v927, %v924
    %v1501 = vpack.c.b16 %v931, %v928
    %v1502 = vpack.c.b16 %v932, %v929
    %v1503 = vpack.c.b16 %v933, %v930
    %v1504 = vpack.c.b16 %v937, %v934
    %v1505 = vpack.c.b16 %v938, %v935
    %v1506 = vpack.c.b16 %v939, %v936
    %v1507 = vpack.c.b16 %v943, %v940
    %v1508 = vpack.c.b16 %v944, %v941
    %v1509 = vpack.c.b16 %v945, %v942
    %v1510 = vpack.c.b16 %v949, %v946
    %v1511 = vpack.c.b16 %v950, %v947
    %v1512 = vpack.c.b16 %v951, %v948
    %v1513 = vpack.c.b16 %v955, %v952
    %v1514 = vpack.c.b16 %v956, %v953
    %v1515 = vpack.c.b16 %v957, %v954
    %v1516 = vpack.c.b16 %v961, %v958
    %v1517 = vpack.c.b16 %v962, %v959
    %v1518 = vpack.c.b16 %v963, %v960
    %v1519 = vpack.c.b16 %v967, %v964
    %v1520 = vpack.c.b16 %v968, %v965
    %v1521 = vpack.c.b16 %v969, %v966
    %v1522 = vpack.c.b16 %v973, %v970
    %v1523 = vpack.c.b16 %v974, %v971
    %v1524 = vpack.c.b16 %v975, %v972
    %v1525 = vpack.c.b16 %v979, %v976
    %v1526 = vpack.c.b16 %v980, %v977
    %v1527 = vpack.c.b16 %v981, %v978
    %v1528 = vpack.c.b16 %v985, %v982
    %v1529 = vpack.c.b16 %v986, %v983
    %v1530 = vpack.c.b16 %v987, %v984
    %v1531 = vpack.c.b16 %v991, %v988
    %v1532 = vpack.c.b16 %v992, %v989
    %v1533 = vpack.c.b16 %v993, %v990
    %v1534 = vpack.c.b16 %v997, %v994
    %v1535 = vpack.c.b16 %v998, %v995
    %v1536 = vpack.c.b16 %v999, %v996
    %v1537 = vpack.c.b16 %v1003, %v1000
    %v1538 = vpack.c.b16 %v1004, %v1001
    %v1539 = vpack.c.b16 %v1005, %v1002
    %v1540 = vpack.c.b16 %v1009, %v1006
    %v1541 = vpack.c.b16 %v1010, %v1007
    %v1542 = vpack.c.b16 %v1011, %v1008
    %v1543 = vpack.c.b16 %v1015, %v1012
    %v1544 = vpack.c.b16 %v1016, %v1013
    %v1545 = vpack.c.b16 %v1017, %v1014
    %v1546 = vpack.c.b16 %v1021, %v1018
    %v1547 = vpack.c.b16 %v1022, %v1019
    %v1548 = vpack.c.b16 %v1023, %v1020
    %v1549 = vpack.c.b16 %v1027, %v1024
    %v1550 = vpack.c.b16 %v1028, %v1025
    %v1551 = vpack.c.b16 %v1029, %v1026
    %v1552 = vpack.c.b16 %v1033, %v1030
    %v1553 = vpack.c.b16 %v1034, %v1031
    %v1554 = vpack.c.b16 %v1035, %v1032
    %v1555 = vpack.c.b16 %v1039, %v1036
    %v1556 = vpack.c.b16 %v1040, %v1037
    %v1557 = vpack.c.b16 %v1041, %v1038
    %v1558 = vpack.c.b16 %v1045, %v1042
    %v1559 = vpack.c.b16 %v1046, %v1043
    %v1560 = vpack.c.b16 %v1047, %v1044
    %v1561 = vpack.c.b16 %v1051, %v1048
    %v1562 = vpack.c.b16 %v1052, %v1049
    %v1563 = vpack.c.b16 %v1053, %v1050
    %v1564 = vpack.c.b16 %v1057, %v1054
    %v1565 = vpack.c.b16 %v1058, %v1055
    %v1566 = vpack.c.b16 %v1059, %v1056
    %v1567 = vpack.c.b16 %v1063, %v1060
    %v1568 = vpack.c.b16 %v1064, %v1061
    %v1569 = vpack.c.b16 %v1065, %v1062
    %v1570 = vpack.c.b16 %v1069, %v1066
    %v1571 = vpack.c.b16 %v1070, %v1067
    %v1572 = vpack.c.b16 %v1071, %v1068
    %v1573 = vpack.c.b16 %v1075, %v1072
    %v1574 = vpack.c.b16 %v1076, %v1073
    %v1575 = vpack.c.b16 %v1077, %v1074
    %v1576 = vpack.c.b16 %v1081, %v1078
    %v1577 = vpack.c.b16 %v1082, %v1079
    %v1578 = vpack.c.b16 %v1083, %v1080
    %v1579 = vpack.c.b16 %v1087, %v1084
    %v1580 = vpack.c.b16 %v1088, %v1085
    %v1581 = vpack.c.b16 %v1089, %v1086
    %v1582 = vpack.c.b16 %v1093, %v1090
    %v1583 = vpack.c.b16 %v1094, %v1091
    %v1584 = vpack.c.b16 %v1095, %v1092
    %v1585 = vpack.c.b16 %v1099, %v1096
    %v1586 = vpack.c.b16 %v1100, %v1097
    %v1587 = vpack.c.b16 %v1101, %v1098
    %v1588 = vpack.c.b16 %v1105, %v1102
    %v1589 = vpack.c.b16 %v1106, %v1103
    %v1590 = vpack.c.b16 %v1107, %v1104
    %v1591 = vpack.c.b16 %v1111, %v1108
    %v1592 = vpack.c.b16 %v1112, %v1109
    %v1593 = vpack.c.b16 %v1113, %v1110
    %v1594 = vpack.c.b16 %v1117, %v1114
    %v1595 = vpack.c.b16 %v1118, %v1115
    %v1596 = vpack.c.b16 %v1119, %v1116
    %v1597 = vpack.c.b16 %v1123, %v1120
    %v1598 = vpack.c.b16 %v1124, %v1121
    %v1599 = vpack.c.b16 %v1125, %v1122
    %v1600 = vpack.c.b16 %v1129, %v1126
    %v1601 = vpack.c.b16 %v1130, %v1127
    %v1602 = vpack.c.b16 %v1131, %v1128
    %v1603 = vpack.c.b16 %v1135, %v1132
    %v1604 = vpack.c.b16 %v1136, %v1133
    %v1605 = vpack.c.b16 %v1137, %v1134
    %v1606 = vpack.c.b16 %v1141, %v1138
    %v1607 = vpack.c.b16 %v1142, %v1139
    %v1608 = vpack.c.b16 %v1143, %v1140
    %v1609 = vpack.c.b16 %v1147, %v1144
    %v1610 = vpack.c.b16 %v1148, %v1145
    %v1611 = vpack.c.b16 %v1149, %v1146
    %v1612 = vpack.c.b16 %v1153, %v1150
    %v1613 = vpack.c.b16 %v1154, %v1151
    %v1614 = vpack.c.b16 %v1155, %v1152
    %v1615 = vpack.c.b16 %v1159, %v1156
    %v1616 = vpack.c.b16 %v1160, %v1157
    %v1617 = vpack.c.b16 %v1161, %v1158
    %v1618 = vpack.c.b16 %v1165, %v1162
    %v1619 = vpack.c.b16 %v1166, %v1163
    %v1620 = vpack.c.b16 %v1167, %v1164
    %v1621 = vpack.c.b16 %v1171, %v1168
    %v1622 = vpack.c.b16 %v1172, %v1169
    %v1623 = vpack.c.b16 %v1173, %v1170
    %v1624 = vpack.c.b16 %v1177, %v1174
    %v1625 = vpack.c.b16 %v1178, %v1175
    %v1626 = vpack.c.b16 %v1179, %v1176
    %v1627 = vpack.c.b16 %v1183, %v1180
    %v1628 = vpack.c.b16 %v1184, %v1181
    %v1629 = vpack.c.b16 %v1185, %v1182
    %v1630 = vpack.c.b16 %v1189, %v1186
    %v1631 = vpack.c.b16 %v1190, %v1187
    %v1632 = vpack.c.b16 %v1191, %v1188
    %v1633 = vpack.c.b16 %v1195, %v1192
    %v1634 = vpack.c.b16 %v1196, %v1193
    %v1635 = vpack.c.b16 %v1197, %v1194
    %v1636 = vpack.c.b16 %v1201, %v1198
    %v1637 = vpack.c.b16 %v1202, %v1199
    %v1638 = vpack.c.b16 %v1203, %v1200
    %v1639 = vpack.c.b16 %v1207, %v1204
    %v1640 = vpack.c.b16 %v1208, %v1205
    %v1641 = vpack.c.b16 %v1209, %v1206
    %v1642 = vpack.c.b16 %v1213, %v1210
    %v1643 = vpack.c.b16 %v1214, %v1211
    %v1644 = vpack.c.b16 %v1215, %v1212
    %v1645 = vpack.c.b16 %v1219, %v1216
    %v1646 = vpack.c.b16 %v1220, %v1217
    %v1647 = vpack.c.b16 %v1221, %v1218
    %v1648 = vpack.c.b16 %v1225, %v1222
    %v1649 = vpack.c.b16 %v1226, %v1223
    %v1650 = vpack.c.b16 %v1227, %v1224
    %v1651 = vpack.c.b16 %v1231, %v1228
    %v1652 = vpack.c.b16 %v1232, %v1229
    %v1653 = vpack.c.b16 %v1233, %v1230
    %v1654 = vpack.c.b16 %v1237, %v1234
    %v1655 = vpack.c.b16 %v1238, %v1235
    %v1656 = vpack.c.b16 %v1239, %v1236
    %v1657 = vpack.c.b16 %v1243, %v1240
    %v1658 = vpack.c.b16 %v1244, %v1241
    %v1659 = vpack.c.b16 %v1245, %v1242
    %v1660 = vpack.c.b16 %v1249, %v1246
    %v1661 = vpack.c.b16 %v1250, %v1247
    %v1662 = vpack.c.b16 %v1251, %v1248
    %v1663 = vpack.c.b16 %v1255, %v1252
    %v1664 = vpack.c.b16 %v1256, %v1253
    %v1665 = vpack.c.b16 %v1257, %v1254
    %v1666 = vpack.c.b16 %v1261, %v1258
    %v1667 = vpack.c.b16 %v1262, %v1259
    %v1668 = vpack.c.b16 %v1263, %v1260
    %v1669 = vpack.c.b16 %v1267, %v1264
    %v1670 = vpack.c.b16 %v1268, %v1265
    %v1671 = vpack.c.b16 %v1269, %v1266
    %v1672 = vpack.c.b16 %v1273, %v1270
    %v1673 = vpack.c.b16 %v1274, %v1271
    %v1674 = vpack.c.b16 %v1275, %v1272
    %v1675 = vpack.c.b16 %v1279, %v1276
    %v1676 = vpack.c.b16 %v1280, %v1277
    %v1677 = vpack.c.b16 %v1281, %v1278
    %v1678 = vpack.c.b16 %v1285, %v1282
    %v1679 = vpack.c.b16 %v1286, %v1283
    %v1680 = vpack.c.b16 %v1287, %v1284
    %v1681 = vpack.c.b16 %v1291, %v1288
    %v1682 = vpack.c.b16 %v1292, %v1289
    %v1683 = vpack.c.b16 %v1293, %v1290
    %v1684 = vpack.c.b16 %v1297, %v1294
    %v1685 = vpack.c.b16 %v1298, %v1295
    %v1686 = vpack.c.b16 %v1299, %v1296
    %v1687 = vpack.c.b16 %v1303, %v1300
    %v1688 = vpack.c.b16 %v1304, %v1301
    %v1689 = vpack.c.b16 %v1305, %v1302
    %v1690 = vpack.c.b16 %v1309, %v1306
    %v1691 = vpack.c.b16 %v1310, %v1307
    %v1692 = vpack.c.b16 %v1311, %v1308
    %v1693 = vpack.c.b16 %v1315, %v1312
    %v1694 = vpack.c.b16 %v1316, %v1313
    %v1695 = vpack.c.b16 %v1317, %v1314
    %v1696 = vpack.c.b16 %v1321, %v1318
    %v1697 = vpack.c.b16 %v1322, %v1319
    %v1698 = vpack.c.b16 %v1323, %v1320
    %v1699 = vpack.c.b16 %v1327, %v1324
    %v1700 = vpack.c.b16 %v1328, %v1325
    %v1701 = vpack.c.b16 %v1329, %v1326
    %v1702 = vpack.c.b16 %v1333, %v1330
    %v1703 = vpack.c.b16 %v1334, %v1331
    %v1704 = vpack.c.b16 %v1335, %v1332
    %v1705 = vpack.c.b16 %v1339, %v1336
    %v1706 = vpack.c.b16 %v1340, %v1337
    %v1707 = vpack.c.b16 %v1341, %v1338
    %v1708 = vpack.c.b16 %v1345, %v1342
    %v1709 = vpack.c.b16 %v1346, %v1343
    %v1710 = vpack.c.b16 %v1347, %v1344
    %v1711 = vpack.c.b16 %v1351, %v1348
    %v1712 = vpack.c.b16 %v1352, %v1349
    %v1713 = vpack.c.b16 %v1353, %v1350
    %v1714 = vpack.c.b16 %v1357, %v1354
    %v1715 = vpack.c.b16 %v1358, %v1355
    %v1716 = vpack.c.b16 %v1359, %v1356
    %v1717 = vpack.c.b16 %v1363, %v1360
    %v1718 = vpack.c.b16 %v1364, %v1361
    %v1719 = vpack.c.b16 %v1365, %v1362
    %v1720 = vpack.c.b16 %v1369, %v1366
    %v1721 = vpack.c.b16 %v1370, %v1367
    %v1722 = vpack.c.b16 %v1371, %v1368
    %v1723 = vpack.c.b16 %v1375, %v1372
    %v1724 = vpack.c.b16 %v1376, %v1373
    %v1725 = vpack.c.b16 %v1377, %v1374
    %v1726 = vpack.c.b16 %v1381, %v1378
    %v1727 = vpack.c.b16 %v1382, %v1379
    %v1728 = vpack.c.b16 %v1383, %v1380
    %v1729 = vpack.c.b16 %v1387, %v1384
    %v1730 = vpack.c.b16 %v1388, %v1385
    %v1731 = vpack.c.b16 %v1389, %v1386
    %v1732 = vpack.c.b16 %v1393, %v1390
    %v1733 = vpack.c.b16 %v1394, %v1391
    %v1734 = vpack.c.b16 %v1395, %v1392
    %v1735 = vpack.c.b16 %v1399, %v1396
    %v1736 = vpack.c.b16 %v1400, %v1397
    %v1737 = vpack.c.b16 %v1401, %v1398
    %v1738 = vpack.c.b16 %v1405, %v1402
    %v1739 = vpack.c.b16 %v1406, %v1403
    %v1740 = vpack.c.b16 %v1407, %v1404
    %v1741 = vpack.c.b16 %v1411, %v1408
    %v1742 = vpack.c.b16 %v1412, %v1409
    %v1743 = vpack.c.b16 %v1413, %v1410
    %v1744 = vpack.c.b16 %v1417, %v1414
    %v1745 = vpack.c.b16 %v1418, %v1415
    %v1746 = vpack.c.b16 %v1419, %v1416
    %v1747 = vpack.c.b16 %v1423, %v1420
    %v1748 = vpack.c.b16 %v1424, %v1421
    %v1749 = vpack.c.b16 %v1425, %v1422
    %v1750 = vpack.c.b16 %v1429, %v1426
    %v1751 = vpack.c.b16 %v1430, %v1427
    %v1752 = vpack.c.b16 %v1431, %v1428
    %v1753 = vpack.c.b16 %v1435, %v1432
    %v1754 = vpack.c.b16 %v1436, %v1433
    %v1755 = vpack.c.b16 %v1437, %v1434
    %v1756 = vpack.c.b16 %v1441, %v1438
    %v1757 = vpack.c.b16 %v1442, %v1439
    %v1758 = vpack.c.b16 %v1443, %v1440
    %v1759 = vpack.c.b16 %v1447, %v1444
    %v1760 = vpack.c.b16 %v1448, %v1445
    %v1761 = vpack.c.b16 %v1449, %v1446
    %v1762 = vpack.c.b16 %v1453, %v1450
    %v1763 = vpack.c.b16 %v1454, %v1451
    %v1764 = vpack.c.b16 %v1455, %v1452
    %v1765 = vpack.c.b16 %v1459, %v1456
    %v1766 = vpack.c.b16 %v1460, %v1457
    %v1767 = vpack.c.b16 %v1461, %v1458
    %v1768 = vpack.c.b16 %v1465, %v1462
    %v1769 = vpack.c.b16 %v1466, %v1463
    %v1770 = vpack.c.b16 %v1467, %v1464
    %v1771 = vpack.c.b16 %v1471, %v1468
    %v1772 = vpack.c.b16 %v1472, %v1469
    %v1773 = vpack.c.b16 %v1473, %v1470
    %v1774 = vpack.c.b16 %v1477, %v1474
    %v1775 = vpack.c.b16 %v1478, %v1475
    %v1776 = vpack.c.b16 %v1479, %v1476
    %v1777 = vpack.c.b16 %v1483, %v1480
    %v1778 = vpack.c.b16 %v1484, %v1481
    %v1779 = vpack.c.b16 %v1485, %v1482
    %v1780 = vpack.c.b16 %v1489, %v1486
    %v1781 = vpack.c.b16 %v1490, %v1487
    %v1782 = vpack.c.b16 %v1491, %v1488
    %v1783 = vpack.c.b16 %v1495, %v1492
    %v1784 = vpack.c.b16 %v1496, %v1493
    %v1785 = vpack.c.b16 %v1497, %v1494
    %2074 = vmatprep.subr.bf16.mxu0 %v1520
    %2075 = vmatpush1.bf16.msra.mxu0 %v1519
    %2076 = vmatprep.subr.bf16.mxu0 %v1517
    %2077 = vmatpush1.bf16.msra.mxu0 %v1516
    %2078 = vmatprep.subr.bf16.mxu0 %v1514
    %2079 = vmatpush1.bf16.msra.mxu0 %v1513
    %2080 = vmatprep.subr.bf16.mxu0 %v1511
    %2081 = vmatpush1.bf16.msra.mxu0 %v1510
    %2082 = vmatprep.subr.bf16.mxu0 %v1508
    %2083 = vmatpush1.bf16.msra.mxu0 %v1507
    %2084 = vmatprep.subr.bf16.mxu0 %v1505
    %2085 = vmatpush1.bf16.msra.mxu0 %v1504
    %2086 = vmatprep.subr.bf16.mxu0 %v1502
    %2087 = vmatpush1.bf16.msra.mxu0 %v1501
    %2088 = vmatprep.subr.bf16.mxu0 %v1499
    %2089 = vmatpush1.bf16.msra.mxu0 %v1498
    %2090 = vmatprep.subr.bf16.mxu0 %v1544
    %2091 = vmatpush2.bf16.msra.mxu0 %v1543
    %2092 = vmatprep.subr.bf16.mxu0 %v1541
    %2093 = vmatpush2.bf16.msra.mxu0 %v1540
    %2094 = vmatprep.subr.bf16.mxu0 %v1538
    %2095 = vmatpush2.bf16.msra.mxu0 %v1537
    %2096 = vmatprep.subr.bf16.mxu0 %v1535
    %2097 = vmatpush2.bf16.msra.mxu0 %v1534
    %2098 = vmatprep.subr.bf16.mxu0 %v1532
    %2099 = vmatpush2.bf16.msra.mxu0 %v1531
    %2100 = vmatprep.subr.bf16.mxu0 %v1529
    %2101 = vmatpush2.bf16.msra.mxu0 %v1528
    %2102 = vmatprep.subr.bf16.mxu0 %v1526
    %2103 = vmatpush2.bf16.msra.mxu0 %v1525
    %2104 = vmatprep.subr.bf16.mxu0 %v1523
    %2105 = vmatpush2.bf16.msra.mxu0 %v1522
    %2106 = vmatprep.mubr.bf16.mxu0 %v126
    %2107 = vmatmul.mubr.bf16.gmra.mxu0 %v125
    %v2108 = vpop.f32.mrf.mxu0
    %v2109 = vadd.f32 %v526, %v2108
    %v2110 = vpop.f32.mrf.mxu0
    %v2111 = vadd.f32 %v530, %v2110
    %v2112 = vpop.f32.mrf.mxu0
    %v2113 = vadd.f32 %v526, %v2112
    %v2114 = vpop.f32.mrf.mxu0
    %v2115 = vadd.f32 %v530, %v2114
    %2116 = vdwg.mxu0
    %2117 = vmatprep.subr.bf16.mxu0 %v1568
    %2118 = vmatpush1.bf16.msra.mxu0 %v1567
    %2119 = vmatprep.subr.bf16.mxu0 %v1565
    %2120 = vmatpush1.bf16.msra.mxu0 %v1564
    %2121 = vmatprep.subr.bf16.mxu0 %v1562
    %2122 = vmatpush1.bf16.msra.mxu0 %v1561
    %2123 = vmatprep.subr.bf16.mxu0 %v1559
    %2124 = vmatpush1.bf16.msra.mxu0 %v1558
    %2125 = vmatprep.subr.bf16.mxu0 %v1556
    %2126 = vmatpush1.bf16.msra.mxu0 %v1555
    %2127 = vmatprep.subr.bf16.mxu0 %v1553
    %2128 = vmatpush1.bf16.msra.mxu0 %v1552
    %2129 = vmatprep.subr.bf16.mxu0 %v1550
    %2130 = vmatpush1.bf16.msra.mxu0 %v1549
    %2131 = vmatprep.subr.bf16.mxu0 %v1547
    %2132 = vmatpush1.bf16.msra.mxu0 %v1546
    %2133 = vmatprep.subr.bf16.mxu0 %v1592
    %2134 = vmatpush2.bf16.msra.mxu0 %v1591
    %2135 = vmatprep.subr.bf16.mxu0 %v1589
    %2136 = vmatpush2.bf16.msra.mxu0 %v1588
    %2137 = vmatprep.subr.bf16.mxu0 %v1586
    %2138 = vmatpush2.bf16.msra.mxu0 %v1585
    %2139 = vmatprep.subr.bf16.mxu0 %v1583
    %2140 = vmatpush2.bf16.msra.mxu0 %v1582
    %2141 = vmatprep.subr.bf16.mxu0 %v1580
    %2142 = vmatpush2.bf16.msra.mxu0 %v1579
    %2143 = vmatprep.subr.bf16.mxu0 %v1577
    %2144 = vmatpush2.bf16.msra.mxu0 %v1576
    %2145 = vmatprep.subr.bf16.mxu0 %v1574
    %2146 = vmatpush2.bf16.msra.mxu0 %v1573
    %2147 = vmatprep.subr.bf16.mxu0 %v1571
    %2148 = vmatpush2.bf16.msra.mxu0 %v1570
    %2149 = vmatprep.mubr.bf16.mxu0 %v128
    %2150 = vmatmul.mubr.bf16.gmra.mxu0 %v127
    %v2151 = vpop.f32.mrf.mxu0
    %v2152 = vadd.f32 %v2109, %v2151
    %v2153 = vpop.f32.mrf.mxu0
    %v2154 = vadd.f32 %v2111, %v2153
    %v2155 = vpop.f32.mrf.mxu0
    %v2156 = vadd.f32 %v2113, %v2155
    %v2157 = vpop.f32.mrf.mxu0
    %v2158 = vadd.f32 %v2115, %v2157
    %2159 = vdwg.mxu0
    %2160 = vmatprep.subr.bf16.mxu0 %v1616
    %2161 = vmatpush1.bf16.msra.mxu0 %v1615
    %2162 = vmatprep.subr.bf16.mxu0 %v1613
    %2163 = vmatpush1.bf16.msra.mxu0 %v1612
    %2164 = vmatprep.subr.bf16.mxu0 %v1610
    %2165 = vmatpush1.bf16.msra.mxu0 %v1609
    %2166 = vmatprep.subr.bf16.mxu0 %v1607
    %2167 = vmatpush1.bf16.msra.mxu0 %v1606
    %2168 = vmatprep.subr.bf16.mxu0 %v1604
    %2169 = vmatpush1.bf16.msra.mxu0 %v1603
    %2170 = vmatprep.subr.bf16.mxu0 %v1601
    %2171 = vmatpush1.bf16.msra.mxu0 %v1600
    %2172 = vmatprep.subr.bf16.mxu0 %v1598
    %2173 = vmatpush1.bf16.msra.mxu0 %v1597
    %2174 = vmatprep.subr.bf16.mxu0 %v1595
    %2175 = vmatpush1.bf16.msra.mxu0 %v1594
    %2176 = vmatprep.subr.bf16.mxu0 %v1640
    %2177 = vmatpush2.bf16.msra.mxu0 %v1639
    %2178 = vmatprep.subr.bf16.mxu0 %v1637
    %2179 = vmatpush2.bf16.msra.mxu0 %v1636
    %2180 = vmatprep.subr.bf16.mxu0 %v1634
    %2181 = vmatpush2.bf16.msra.mxu0 %v1633
    %2182 = vmatprep.subr.bf16.mxu0 %v1631
    %2183 = vmatpush2.bf16.msra.mxu0 %v1630
    %2184 = vmatprep.subr.bf16.mxu0 %v1628
    %2185 = vmatpush2.bf16.msra.mxu0 %v1627
    %2186 = vmatprep.subr.bf16.mxu0 %v1625
    %2187 = vmatpush2.bf16.msra.mxu0 %v1624
    %2188 = vmatprep.subr.bf16.mxu0 %v1622
    %2189 = vmatpush2.bf16.msra.mxu0 %v1621
    %2190 = vmatprep.subr.bf16.mxu0 %v1619
    %2191 = vmatpush2.bf16.msra.mxu0 %v1618
    %2192 = vmatprep.mubr.bf16.mxu0 %v130
    %2193 = vmatmul.mubr.bf16.gmra.mxu0 %v129
    %v2194 = vpop.f32.mrf.mxu0
    %v2195 = vadd.f32 %v2152, %v2194
    %v2196 = vpop.f32.mrf.mxu0
    %v2197 = vadd.f32 %v2154, %v2196
    %v2198 = vpop.f32.mrf.mxu0
    %v2199 = vadd.f32 %v2156, %v2198
    %v2200 = vpop.f32.mrf.mxu0
    %v2201 = vadd.f32 %v2158, %v2200
    %2202 = vdwg.mxu0
    %2203 = vmatprep.subr.bf16.mxu0 %v1664
    %2204 = vmatpush1.bf16.msra.mxu0 %v1663
    %2205 = vmatprep.subr.bf16.mxu0 %v1661
    %2206 = vmatpush1.bf16.msra.mxu0 %v1660
    %2207 = vmatprep.subr.bf16.mxu0 %v1658
    %2208 = vmatpush1.bf16.msra.mxu0 %v1657
    %2209 = vmatprep.subr.bf16.mxu0 %v1655
    %2210 = vmatpush1.bf16.msra.mxu0 %v1654
    %2211 = vmatprep.subr.bf16.mxu0 %v1652
    %2212 = vmatpush1.bf16.msra.mxu0 %v1651
    %2213 = vmatprep.subr.bf16.mxu0 %v1649
    %2214 = vmatpush1.bf16.msra.mxu0 %v1648
    %2215 = vmatprep.subr.bf16.mxu0 %v1646
    %2216 = vmatpush1.bf16.msra.mxu0 %v1645
    %2217 = vmatprep.subr.bf16.mxu0 %v1643
    %2218 = vmatpush1.bf16.msra.mxu0 %v1642
    %2219 = vmatprep.subr.bf16.mxu0 %v1688
    %2220 = vmatpush2.bf16.msra.mxu0 %v1687
    %2221 = vmatprep.subr.bf16.mxu0 %v1685
    %2222 = vmatpush2.bf16.msra.mxu0 %v1684
    %2223 = vmatprep.subr.bf16.mxu0 %v1682
    %2224 = vmatpush2.bf16.msra.mxu0 %v1681
    %2225 = vmatprep.subr.bf16.mxu0 %v1679
    %2226 = vmatpush2.bf16.msra.mxu0 %v1678
    %2227 = vmatprep.subr.bf16.mxu0 %v1676
    %2228 = vmatpush2.bf16.msra.mxu0 %v1675
    %2229 = vmatprep.subr.bf16.mxu0 %v1673
    %2230 = vmatpush2.bf16.msra.mxu0 %v1672
    %2231 = vmatprep.subr.bf16.mxu0 %v1670
    %2232 = vmatpush2.bf16.msra.mxu0 %v1669
    %2233 = vmatprep.subr.bf16.mxu0 %v1667
    %2234 = vmatpush2.bf16.msra.mxu0 %v1666
    %2235 = vmatprep.mubr.bf16.mxu0 %v132
    %2236 = vmatmul.mubr.bf16.gmra.mxu0 %v131
    %v2237 = vpop.f32.mrf.mxu0
    %v2238 = vadd.f32 %v2195, %v2237
    %v2239 = vpop.f32.mrf.mxu0
    %v2240 = vadd.f32 %v2197, %v2239
    %v2241 = vpop.f32.mrf.mxu0
    %v2242 = vadd.f32 %v2199, %v2241
    %v2243 = vpop.f32.mrf.mxu0
    %v2244 = vadd.f32 %v2201, %v2243
    %2245 = vdwg.mxu0
    %2246 = vmatprep.subr.bf16.mxu0 %v1712
    %2247 = vmatpush1.bf16.msra.mxu0 %v1711
    %2248 = vmatprep.subr.bf16.mxu0 %v1709
    %2249 = vmatpush1.bf16.msra.mxu0 %v1708
    %2250 = vmatprep.subr.bf16.mxu0 %v1706
    %2251 = vmatpush1.bf16.msra.mxu0 %v1705
    %2252 = vmatprep.subr.bf16.mxu0 %v1703
    %2253 = vmatpush1.bf16.msra.mxu0 %v1702
    %2254 = vmatprep.subr.bf16.mxu0 %v1700
    %2255 = vmatpush1.bf16.msra.mxu0 %v1699
    %2256 = vmatprep.subr.bf16.mxu0 %v1697
    %2257 = vmatpush1.bf16.msra.mxu0 %v1696
    %2258 = vmatprep.subr.bf16.mxu0 %v1694
    %2259 = vmatpush1.bf16.msra.mxu0 %v1693
    %2260 = vmatprep.subr.bf16.mxu0 %v1691
    %2261 = vmatpush1.bf16.msra.mxu0 %v1690
    %2262 = vmatprep.subr.bf16.mxu0 %v1736
    %2263 = vmatpush2.bf16.msra.mxu0 %v1735
    %2264 = vmatprep.subr.bf16.mxu0 %v1733
    %2265 = vmatpush2.bf16.msra.mxu0 %v1732
    %2266 = vmatprep.subr.bf16.mxu0 %v1730
    %2267 = vmatpush2.bf16.msra.mxu0 %v1729
    %2268 = vmatprep.subr.bf16.mxu0 %v1727
    %2269 = vmatpush2.bf16.msra.mxu0 %v1726
    %2270 = vmatprep.subr.bf16.mxu0 %v1724
    %2271 = vmatpush2.bf16.msra.mxu0 %v1723
    %2272 = vmatprep.subr.bf16.mxu0 %v1721
    %2273 = vmatpush2.bf16.msra.mxu0 %v1720
    %2274 = vmatprep.subr.bf16.mxu0 %v1718
    %2275 = vmatpush2.bf16.msra.mxu0 %v1717
    %2276 = vmatprep.subr.bf16.mxu0 %v1715
    %2277 = vmatpush2.bf16.msra.mxu0 %v1714
    %2278 = vmatprep.mubr.bf16.mxu0 %v134
    %2279 = vmatmul.mubr.bf16.gmra.mxu0 %v133
    %v2280 = vpop.f32.mrf.mxu0
    %v2281 = vadd.f32 %v2238, %v2280
    %v2282 = vpop.f32.mrf.mxu0
    %v2283 = vadd.f32 %v2240, %v2282
    %v2284 = vpop.f32.mrf.mxu0
    %v2285 = vadd.f32 %v2242, %v2284
    %v2286 = vpop.f32.mrf.mxu0
    %v2287 = vadd.f32 %v2244, %v2286
    %2288 = vdwg.mxu0
    %2289 = vmatprep.subr.bf16.mxu0 %v1760
    %2290 = vmatpush1.bf16.msra.mxu0 %v1759
    %2291 = vmatprep.subr.bf16.mxu0 %v1757
    %2292 = vmatpush1.bf16.msra.mxu0 %v1756
    %2293 = vmatprep.subr.bf16.mxu0 %v1754
    %2294 = vmatpush1.bf16.msra.mxu0 %v1753
    %2295 = vmatprep.subr.bf16.mxu0 %v1751
    %2296 = vmatpush1.bf16.msra.mxu0 %v1750
    %2297 = vmatprep.subr.bf16.mxu0 %v1748
    %2298 = vmatpush1.bf16.msra.mxu0 %v1747
    %2299 = vmatprep.subr.bf16.mxu0 %v1745
    %2300 = vmatpush1.bf16.msra.mxu0 %v1744
    %2301 = vmatprep.subr.bf16.mxu0 %v1742
    %2302 = vmatpush1.bf16.msra.mxu0 %v1741
    %2303 = vmatprep.subr.bf16.mxu0 %v1739
    %2304 = vmatpush1.bf16.msra.mxu0 %v1738
    %2305 = vmatprep.subr.bf16.mxu0 %v1784
    %2306 = vmatpush2.bf16.msra.mxu0 %v1783
    %2307 = vmatprep.subr.bf16.mxu0 %v1781
    %2308 = vmatpush2.bf16.msra.mxu0 %v1780
    %2309 = vmatprep.subr.bf16.mxu0 %v1778
    %2310 = vmatpush2.bf16.msra.mxu0 %v1777
    %2311 = vmatprep.subr.bf16.mxu0 %v1775
    %2312 = vmatpush2.bf16.msra.mxu0 %v1774
    %2313 = vmatprep.subr.bf16.mxu0 %v1772
    %2314 = vmatpush2.bf16.msra.mxu0 %v1771
    %2315 = vmatprep.subr.bf16.mxu0 %v1769
    %2316 = vmatpush2.bf16.msra.mxu0 %v1768
    %2317 = vmatprep.subr.bf16.mxu0 %v1766
    %2318 = vmatpush2.bf16.msra.mxu0 %v1765
    %2319 = vmatprep.subr.bf16.mxu0 %v1763
    %2320 = vmatpush2.bf16.msra.mxu0 %v1762
    %2321 = vmatprep.mubr.bf16.mxu0 %v136
    %2322 = vmatmul.mubr.bf16.gmra.mxu0 %v135
    %v2323 = vpop.f32.mrf.mxu0
    %v2324 = vadd.f32 %v2281, %v2323
    %v2325 = vpop.f32.mrf.mxu0
    %v2326 = vadd.f32 %v2283, %v2325
    %v2327 = vpop.f32.mrf.mxu0
    %v2328 = vadd.f32 %v2285, %v2327
    %v2329 = vpop.f32.mrf.mxu0
    %v2330 = vadd.f32 %v2287, %v2329
    %2331 = vdwg.mxu0
    %2332 = vmatprep.subr.bf16.mxu0 0
    %2333 = vmatpush1.bf16.msra.mxu0 %v1521
    %2334 = vmatprep.subr.bf16.mxu0 0
    %2335 = vmatpush1.bf16.msra.mxu0 %v1518
    %2336 = vmatprep.subr.bf16.mxu0 0
    %2337 = vmatpush1.bf16.msra.mxu0 %v1515
    %2338 = vmatprep.subr.bf16.mxu0 0
    %2339 = vmatpush1.bf16.msra.mxu0 %v1512
    %2340 = vmatprep.subr.bf16.mxu0 0
    %2341 = vmatpush1.bf16.msra.mxu0 %v1509
    %2342 = vmatprep.subr.bf16.mxu0 0
    %2343 = vmatpush1.bf16.msra.mxu0 %v1506
    %2344 = vmatprep.subr.bf16.mxu0 0
    %2345 = vmatpush1.bf16.msra.mxu0 %v1503
    %2346 = vmatprep.subr.bf16.mxu0 0
    %2347 = vmatpush1.bf16.msra.mxu0 %v1500
    %2348 = vmatprep.subr.bf16.mxu0 0
    %2349 = vmatpush2.bf16.msra.mxu0 %v1545
    %2350 = vmatprep.subr.bf16.mxu0 0
    %2351 = vmatpush2.bf16.msra.mxu0 %v1542
    %2352 = vmatprep.subr.bf16.mxu0 0
    %2353 = vmatpush2.bf16.msra.mxu0 %v1539
    %2354 = vmatprep.subr.bf16.mxu0 0
    %2355 = vmatpush2.bf16.msra.mxu0 %v1536
    %2356 = vmatprep.subr.bf16.mxu0 0
    %2357 = vmatpush2.bf16.msra.mxu0 %v1533
    %2358 = vmatprep.subr.bf16.mxu0 0
    %2359 = vmatpush2.bf16.msra.mxu0 %v1530
    %2360 = vmatprep.subr.bf16.mxu0 0
    %2361 = vmatpush2.bf16.msra.mxu0 %v1527
    %2362 = vmatprep.subr.bf16.mxu0 0
    %2363 = vmatpush2.bf16.msra.mxu0 %v1524
    %2364 = vmatprep.mubr.bf16.mxu0 %v126
    %2365 = vmatmul.mubr.bf16.gmra.mxu0 %v125
    %v2366 = vpop.f32.mrf.mxu0
    %v2367 = vadd.f32 %v534, %v2366
    %v2368 = vpop.f32.mrf.mxu0
    %v2369 = vpop.f32.mrf.mxu0
    %v2370 = vadd.f32 %v534, %v2369
    %v2371 = vpop.f32.mrf.mxu0
    %2372 = vdwg.mxu0
    %2373 = vmatprep.subr.bf16.mxu0 0
    %2374 = vmatpush1.bf16.msra.mxu0 %v1569
    %2375 = vmatprep.subr.bf16.mxu0 0
    %2376 = vmatpush1.bf16.msra.mxu0 %v1566
    %2377 = vmatprep.subr.bf16.mxu0 0
    %2378 = vmatpush1.bf16.msra.mxu0 %v1563
    %2379 = vmatprep.subr.bf16.mxu0 0
    %2380 = vmatpush1.bf16.msra.mxu0 %v1560
    %2381 = vmatprep.subr.bf16.mxu0 0
    %2382 = vmatpush1.bf16.msra.mxu0 %v1557
    %2383 = vmatprep.subr.bf16.mxu0 0
    %2384 = vmatpush1.bf16.msra.mxu0 %v1554
    %2385 = vmatprep.subr.bf16.mxu0 0
    %2386 = vmatpush1.bf16.msra.mxu0 %v1551
    %2387 = vmatprep.subr.bf16.mxu0 0
    %2388 = vmatpush1.bf16.msra.mxu0 %v1548
    %2389 = vmatprep.subr.bf16.mxu0 0
    %2390 = vmatpush2.bf16.msra.mxu0 %v1593
    %2391 = vmatprep.subr.bf16.mxu0 0
    %2392 = vmatpush2.bf16.msra.mxu0 %v1590
    %2393 = vmatprep.subr.bf16.mxu0 0
    %2394 = vmatpush2.bf16.msra.mxu0 %v1587
    %2395 = vmatprep.subr.bf16.mxu0 0
    %2396 = vmatpush2.bf16.msra.mxu0 %v1584
    %2397 = vmatprep.subr.bf16.mxu0 0
    %2398 = vmatpush2.bf16.msra.mxu0 %v1581
    %2399 = vmatprep.subr.bf16.mxu0 0
    %2400 = vmatpush2.bf16.msra.mxu0 %v1578
    %2401 = vmatprep.subr.bf16.mxu0 0
    %2402 = vmatpush2.bf16.msra.mxu0 %v1575
    %2403 = vmatprep.subr.bf16.mxu0 0
    %2404 = vmatpush2.bf16.msra.mxu0 %v1572
    %2405 = vmatprep.mubr.bf16.mxu0 %v128
    %2406 = vmatmul.mubr.bf16.gmra.mxu0 %v127
    %v2407 = vpop.f32.mrf.mxu0
    %v2408 = vadd.f32 %v2367, %v2407
    %v2409 = vpop.f32.mrf.mxu0
    %v2410 = vpop.f32.mrf.mxu0
    %v2411 = vadd.f32 %v2370, %v2410
    %v2412 = vpop.f32.mrf.mxu0
    %2413 = vdwg.mxu0
    %2414 = vmatprep.subr.bf16.mxu0 0
    %2415 = vmatpush1.bf16.msra.mxu0 %v1617
    %2416 = vmatprep.subr.bf16.mxu0 0
    %2417 = vmatpush1.bf16.msra.mxu0 %v1614
    %2418 = vmatprep.subr.bf16.mxu0 0
    %2419 = vmatpush1.bf16.msra.mxu0 %v1611
    %2420 = vmatprep.subr.bf16.mxu0 0
    %2421 = vmatpush1.bf16.msra.mxu0 %v1608
    %2422 = vmatprep.subr.bf16.mxu0 0
    %2423 = vmatpush1.bf16.msra.mxu0 %v1605
    %2424 = vmatprep.subr.bf16.mxu0 0
    %2425 = vmatpush1.bf16.msra.mxu0 %v1602
    %2426 = vmatprep.subr.bf16.mxu0 0
    %2427 = vmatpush1.bf16.msra.mxu0 %v1599
    %2428 = vmatprep.subr.bf16.mxu0 0
    %2429 = vmatpush1.bf16.msra.mxu0 %v1596
    %2430 = vmatprep.subr.bf16.mxu0 0
    %2431 = vmatpush2.bf16.msra.mxu0 %v1641
    %2432 = vmatprep.subr.bf16.mxu0 0
    %2433 = vmatpush2.bf16.msra.mxu0 %v1638
    %2434 = vmatprep.subr.bf16.mxu0 0
    %2435 = vmatpush2.bf16.msra.mxu0 %v1635
    %2436 = vmatprep.subr.bf16.mxu0 0
    %2437 = vmatpush2.bf16.msra.mxu0 %v1632
    %2438 = vmatprep.subr.bf16.mxu0 0
    %2439 = vmatpush2.bf16.msra.mxu0 %v1629
    %2440 = vmatprep.subr.bf16.mxu0 0
    %2441 = vmatpush2.bf16.msra.mxu0 %v1626
    %2442 = vmatprep.subr.bf16.mxu0 0
    %2443 = vmatpush2.bf16.msra.mxu0 %v1623
    %2444 = vmatprep.subr.bf16.mxu0 0
    %2445 = vmatpush2.bf16.msra.mxu0 %v1620
    %2446 = vmatprep.mubr.bf16.mxu0 %v130
    %2447 = vmatmul.mubr.bf16.gmra.mxu0 %v129
    %v2448 = vpop.f32.mrf.mxu0
    %v2449 = vadd.f32 %v2408, %v2448
    %v2450 = vpop.f32.mrf.mxu0
    %v2451 = vpop.f32.mrf.mxu0
    %v2452 = vadd.f32 %v2411, %v2451
    %v2453 = vpop.f32.mrf.mxu0
    %2454 = vdwg.mxu0
    %2455 = vmatprep.subr.bf16.mxu0 0
    %2456 = vmatpush1.bf16.msra.mxu0 %v1665
    %2457 = vmatprep.subr.bf16.mxu0 0
    %2458 = vmatpush1.bf16.msra.mxu0 %v1662
    %2459 = vmatprep.subr.bf16.mxu0 0
    %2460 = vmatpush1.bf16.msra.mxu0 %v1659
    %2461 = vmatprep.subr.bf16.mxu0 0
    %2462 = vmatpush1.bf16.msra.mxu0 %v1656
    %2463 = vmatprep.subr.bf16.mxu0 0
    %2464 = vmatpush1.bf16.msra.mxu0 %v1653
    %2465 = vmatprep.subr.bf16.mxu0 0
    %2466 = vmatpush1.bf16.msra.mxu0 %v1650
    %2467 = vmatprep.subr.bf16.mxu0 0
    %2468 = vmatpush1.bf16.msra.mxu0 %v1647
    %2469 = vmatprep.subr.bf16.mxu0 0
    %2470 = vmatpush1.bf16.msra.mxu0 %v1644
    %2471 = vmatprep.subr.bf16.mxu0 0
    %2472 = vmatpush2.bf16.msra.mxu0 %v1689
    %2473 = vmatprep.subr.bf16.mxu0 0
    %2474 = vmatpush2.bf16.msra.mxu0 %v1686
    %2475 = vmatprep.subr.bf16.mxu0 0
    %2476 = vmatpush2.bf16.msra.mxu0 %v1683
    %2477 = vmatprep.subr.bf16.mxu0 0
    %2478 = vmatpush2.bf16.msra.mxu0 %v1680
    %2479 = vmatprep.subr.bf16.mxu0 0
    %2480 = vmatpush2.bf16.msra.mxu0 %v1677
    %2481 = vmatprep.subr.bf16.mxu0 0
    %2482 = vmatpush2.bf16.msra.mxu0 %v1674
    %2483 = vmatprep.subr.bf16.mxu0 0
    %2484 = vmatpush2.bf16.msra.mxu0 %v1671
    %2485 = vmatprep.subr.bf16.mxu0 0
    %2486 = vmatpush2.bf16.msra.mxu0 %v1668
    %2487 = vmatprep.mubr.bf16.mxu0 %v132
    %2488 = vmatmul.mubr.bf16.gmra.mxu0 %v131
    %v2489 = vpop.f32.mrf.mxu0
    %v2490 = vadd.f32 %v2449, %v2489
    %v2491 = vpop.f32.mrf.mxu0
    %v2492 = vpop.f32.mrf.mxu0
    %v2493 = vadd.f32 %v2452, %v2492
    %v2494 = vpop.f32.mrf.mxu0
    %2495 = vdwg.mxu0
    %2496 = vmatprep.subr.bf16.mxu0 0
    %2497 = vmatpush1.bf16.msra.mxu0 %v1713
    %2498 = vmatprep.subr.bf16.mxu0 0
    %2499 = vmatpush1.bf16.msra.mxu0 %v1710
    %2500 = vmatprep.subr.bf16.mxu0 0
    %2501 = vmatpush1.bf16.msra.mxu0 %v1707
    %2502 = vmatprep.subr.bf16.mxu0 0
    %2503 = vmatpush1.bf16.msra.mxu0 %v1704
    %2504 = vmatprep.subr.bf16.mxu0 0
    %2505 = vmatpush1.bf16.msra.mxu0 %v1701
    %2506 = vmatprep.subr.bf16.mxu0 0
    %2507 = vmatpush1.bf16.msra.mxu0 %v1698
    %2508 = vmatprep.subr.bf16.mxu0 0
    %2509 = vmatpush1.bf16.msra.mxu0 %v1695
    %2510 = vmatprep.subr.bf16.mxu0 0
    %2511 = vmatpush1.bf16.msra.mxu0 %v1692
    %2512 = vmatprep.subr.bf16.mxu0 0
    %2513 = vmatpush2.bf16.msra.mxu0 %v1737
    %2514 = vmatprep.subr.bf16.mxu0 0
    %2515 = vmatpush2.bf16.msra.mxu0 %v1734
    %2516 = vmatprep.subr.bf16.mxu0 0
    %2517 = vmatpush2.bf16.msra.mxu0 %v1731
    %2518 = vmatprep.subr.bf16.mxu0 0
    %2519 = vmatpush2.bf16.msra.mxu0 %v1728
    %2520 = vmatprep.subr.bf16.mxu0 0
    %2521 = vmatpush2.bf16.msra.mxu0 %v1725
    %2522 = vmatprep.subr.bf16.mxu0 0
    %2523 = vmatpush2.bf16.msra.mxu0 %v1722
    %2524 = vmatprep.subr.bf16.mxu0 0
    %2525 = vmatpush2.bf16.msra.mxu0 %v1719
    %2526 = vmatprep.subr.bf16.mxu0 0
    %2527 = vmatpush2.bf16.msra.mxu0 %v1716
    %2528 = vmatprep.mubr.bf16.mxu0 %v134
    %2529 = vmatmul.mubr.bf16.gmra.mxu0 %v133
    %v2530 = vpop.f32.mrf.mxu0
    %v2531 = vadd.f32 %v2490, %v2530
    %v2532 = vpop.f32.mrf.mxu0
    %v2533 = vpop.f32.mrf.mxu0
    %v2534 = vadd.f32 %v2493, %v2533
    %v2535 = vpop.f32.mrf.mxu0
    %2536 = vdwg.mxu0
    %2537 = vmatprep.subr.bf16.mxu0 0
    %2538 = vmatpush1.bf16.msra.mxu0 %v1761
    %2539 = vmatprep.subr.bf16.mxu0 0
    %2540 = vmatpush1.bf16.msra.mxu0 %v1758
    %2541 = vmatprep.subr.bf16.mxu0 0
    %2542 = vmatpush1.bf16.msra.mxu0 %v1755
    %2543 = vmatprep.subr.bf16.mxu0 0
    %2544 = vmatpush1.bf16.msra.mxu0 %v1752
    %2545 = vmatprep.subr.bf16.mxu0 0
    %2546 = vmatpush1.bf16.msra.mxu0 %v1749
    %2547 = vmatprep.subr.bf16.mxu0 0
    %2548 = vmatpush1.bf16.msra.mxu0 %v1746
    %2549 = vmatprep.subr.bf16.mxu0 0
    %2550 = vmatpush1.bf16.msra.mxu0 %v1743
    %2551 = vmatprep.subr.bf16.mxu0 0
    %2552 = vmatpush1.bf16.msra.mxu0 %v1740
    %2553 = vmatprep.subr.bf16.mxu0 0
    %2554 = vmatpush2.bf16.msra.mxu0 %v1785
    %2555 = vmatprep.subr.bf16.mxu0 0
    %2556 = vmatpush2.bf16.msra.mxu0 %v1782
    %2557 = vmatprep.subr.bf16.mxu0 0
    %2558 = vmatpush2.bf16.msra.mxu0 %v1779
    %2559 = vmatprep.subr.bf16.mxu0 0
    %2560 = vmatpush2.bf16.msra.mxu0 %v1776
    %2561 = vmatprep.subr.bf16.mxu0 0
    %2562 = vmatpush2.bf16.msra.mxu0 %v1773
    %2563 = vmatprep.subr.bf16.mxu0 0
    %2564 = vmatpush2.bf16.msra.mxu0 %v1770
    %2565 = vmatprep.subr.bf16.mxu0 0
    %2566 = vmatpush2.bf16.msra.mxu0 %v1767
    %2567 = vmatprep.subr.bf16.mxu0 0
    %2568 = vmatpush2.bf16.msra.mxu0 %v1764
    %2569 = vmatprep.mubr.bf16.mxu0 %v136
    %2570 = vmatmul.mubr.bf16.gmra.mxu0 %v135
    %v2571 = vpop.f32.mrf.mxu0
    %v2572 = vadd.f32 %v2531, %v2571
    %v2573 = vpop.f32.mrf.mxu0
    %v2574 = vpop.f32.mrf.mxu0
    %v2575 = vadd.f32 %v2534, %v2574
    %v2576 = vpop.f32.mrf.mxu0
    %2577 = vdwg.mxu0
    %v2578 = vld [vmem:[#allocation8] sm:$0xff]
    %v2579 = vld [vmem:[#allocation8 + $0x8] sm:$0xff]
    %v2580 = vld [vmem:[#allocation8 + $0x10] sm:$0xff]
    %v2581 = vld [vmem:[#allocation8 + $0x18] sm:$0xff]
    %v2582 = vld [vmem:[#allocation8 + $0x20] sm:$0xff]
    %v2583 = vld [vmem:[#allocation8 + $0x28] sm:$0xff]
    %v2584 = vadd.f32 %v2324, %v2578
    %v2585 = vadd.f32 %v2326, %v2579
    %v2586 = vadd.f32 %v2572, %v2580
    %v2587 = vadd.f32 %v2328, %v2581
    %v2588 = vadd.f32 %v2330, %v2582
    %v2589 = vadd.f32 %v2575, %v2583
    %v2590 = vadd.f32 %v2584, %v2585
    %v2591 = vadd.f32 %v2590, %v2586
    %2592 = vadd.xlane.f32.xlu0 %v2591
    %v2593 = vpop.xlane.xlu0 %2592
    %v2594 = vadd.f32 %v2587, %v2588
    %v2595 = vadd.f32 %v2594, %v2589
    %2596 = vadd.xlane.f32.xlu0 %v2595
    %v2597 = vpop.xlane.xlu0 %2596
    %v2598 = vrcp.pop 384.0
    %v2599 = vmul.f32 %v2593, %v2598
    %v2600 = vmul.f32 %v2597, %v2598
    %v2601 = vsub.f32 %v2584, %v2599
    %v2602 = vsub.f32 %v2585, %v2599
    %v2603 = vsub.f32 %v2586, %v2599
    %v2604 = vsub.f32 %v2587, %v2600
    %v2605 = vsub.f32 %v2588, %v2600
    %v2606 = vsub.f32 %v2589, %v2600
    %v2607 = vmul.f32 %v2601, %v2601
    %v2608 = vmul.f32 %v2602, %v2602
    %v2609 = vmul.f32 %v2603, %v2603
    %v2610 = vmul.f32 %v2604, %v2604
    %v2611 = vmul.f32 %v2605, %v2605
    %v2612 = vmul.f32 %v2606, %v2606
    %v2613 = vadd.f32 %v2607, %v2608
    %v2614 = vadd.f32 %v2613, %v2609
    %2615 = vadd.xlane.f32.xlu0 %v2614
    %v2616 = vpop.xlane.xlu0 %2615
    %v2617 = vadd.f32 %v2610, %v2611
    %v2618 = vadd.f32 %v2617, %v2612
    %2619 = vadd.xlane.f32.xlu0 %v2618
    %v2620 = vpop.xlane.xlu0 %2619
    %v2621 = vmul.f32 %v2616, %v2598
    %v2622 = vmul.f32 %v2620, %v2598
    %v2623 = vadd.f32 %v2621, 1e-12
    %v2624 = vadd.f32 %v2622, 1e-12
    %v2625 = vrsqrt.pop %v2623
    %v2626 = vrsqrt.pop %v2624
    %v2627 = vmul.f32 %v2601, %v2625
    %v2628 = vmul.f32 %v2602, %v2625
    %v2629 = vmul.f32 %v2603, %v2625
    %v2630 = vmul.f32 %v2604, %v2626
    %v2631 = vmul.f32 %v2605, %v2626
    %v2632 = vmul.f32 %v2606, %v2626
    %v2633 = vld [vmem:[#allocation10] sm:$0x7]
    %v2635 = vlaneseq
    %v2636 = vshrl.u32 %v2635, 7
    %v2637 = vsub.s32 0, %v2636
    %v2638 = vrot.slane %v2633, %v2637
    %v2639 = vlaneseq
    %v2640 = vshrl.u32 %v2639, 7
    %v2641 = vsub.s32 1, %v2640
    %v2642 = vrot.slane %v2633, %v2641
    %v2643 = vlaneseq
    %v2644 = vshrl.u32 %v2643, 7
    %v2645 = vsub.s32 2, %v2644
    %v2646 = vrot.slane %v2633, %v2645
    %v2650 = vmul.f32 %v2627, %v2638
    %v2651 = vmul.f32 %v2628, %v2642
    %v2652 = vmul.f32 %v2629, %v2646
    %v2653 = vmul.f32 %v2630, %v2638
    %v2654 = vmul.f32 %v2631, %v2642
    %v2655 = vmul.f32 %v2632, %v2646
    %v2656 = vld [vmem:[#allocation11] sm:$0x7]
    %v2658 = vlaneseq
    %v2659 = vshrl.u32 %v2658, 7
    %v2660 = vsub.s32 0, %v2659
    %v2661 = vrot.slane %v2656, %v2660
    %v2662 = vlaneseq
    %v2663 = vshrl.u32 %v2662, 7
    %v2664 = vsub.s32 1, %v2663
    %v2665 = vrot.slane %v2656, %v2664
    %v2666 = vlaneseq
    %v2667 = vshrl.u32 %v2666, 7
    %v2668 = vsub.s32 2, %v2667
    %v2669 = vrot.slane %v2656, %v2668
    %v2673 = vadd.f32 %v2650, %v2661
    %v2674 = vadd.f32 %v2651, %v2665
    %v2675 = vadd.f32 %v2652, %v2669
    %v2676 = vadd.f32 %v2653, %v2661
    %v2677 = vadd.f32 %v2654, %v2665
    %v2678 = vadd.f32 %v2655, %v2669
    %2679 = vst [vmem:[#allocation13] sm:$0xff] %v2673
    %2680 = vst [vmem:[#allocation13 + $0x8] sm:$0xff] %v2674
    %2681 = vst [vmem:[#allocation13 + $0x10] sm:$0xff] %v2675
    %2682 = vst [vmem:[#allocation13 + $0x18] sm:$0xff] %v2676
    %2683 = vst [vmem:[#allocation13 + $0x20] sm:$0xff] %v2677
    %2684 = vst [vmem:[#allocation13 + $0x28] sm:$0xff] %v2678
    // Predicated region
    $region50: #{tpu_custom_call.1} parent=1 // pred_check
      _
    $region51: #{tpu_custom_call.1} parent=1 // pred_check_branch
      %2686 = sbr.rel (0) target = $region53
    $region52: #{tpu_custom_call.1} parent=1 // pred_region
      %s2688 = ssub.s32 768, 768
      %2689 = vsyncadd [#allocation4], %s2688
      %s2690 = sshll.u32 [#allocation13], 4
      %s2691 = int_to_ptr.vmem [resolvable:$true] %s2690
      %2696 = dma.vmem_to_hbm [thread:$0]  %s2691, 768, %s6, [#allocation4], 384, 384, 24
    $region53: #{tpu_custom_call.1} parent=1 // pred_fallthru
      _
    // Predicated region
    $region54: #{tpu_custom_call.1} parent=1 // pred_check
      _
    $region55: #{tpu_custom_call.1} parent=1 // pred_check_branch
      %2698 = sbr.rel (0) target = $region57
    $region56: #{tpu_custom_call.1} parent=1 // pred_region
      %2699 = dma.done [#allocation4], 768
    $region57: #{tpu_custom_call.1} parent=1 // pred_fallthru
      _
    %2700 = vsyncpa [#allocation3], 1
    %2701 = vsyncpa [#allocation6], 1
    %2702 = vsyncpa [#allocation9], 1
    %2703 = vsyncpa [#allocation12], 1
    %2704 = vsyncpa [#allocation4], 1

</llo_original>
